<compile_context>
chip_gen: v5e
topology: v5e:2x2
jax: 0.10.0
libtpu: 0.0.40
codegen_flags: <defaults>
</compile_context>

<pallas_src>
import math

import numpy as np
import jax
import jax.numpy as jnp
from jax import lax
from jax.experimental import pallas as pl
from jax.experimental.pallas import tpu as pltpu

# ----------------------------- configuration --------------------------------
D_MODEL = 32
N_HEADS = 4
D_Q = D_K = D_V = 8          # per-head dims (n_heads * d_k == d_model here)
D_FF = 64
N_LAYERS = 2
LN_EPS = 1e-5
NEG_INF = -1e9               # matches masked_fill_(mask, -1000000000.0)


# ------------------------------ Pallas kernel --------------------------------
def _layernorm(x, gamma, beta):
    # E[x^2] - mu^2 formulation: the two cross-lane reductions are independent
    # so the XLU work overlaps instead of serializing (mu -> (x-mu)^2 -> var).
    mu = jnp.mean(x, axis=-1, keepdims=True)
    msq = jnp.mean(x * x, axis=-1, keepdims=True)
    var = msq - mu * mu
    return (x - mu) * lax.rsqrt(var + LN_EPS) * gamma + beta


def encoder_kernel(lens_ref,                 # VMEM (B,1) int32 valid lengths
                   x_ref, pe_ref,            # VMEM (B,S,D), (S,D)
                   wqkv_ref, wo_ref,         # VMEM (L,D,H*(dq+dk+dv)), (L,H*dv,D)
                   w1_ref, w2_ref,           # VMEM (L,D,D_FF), (L,D_FF,D)
                   ln_ref,                   # VMEM (L,4,D)  rows: g1,b1,g2,b2
                   out_ref,                  # VMEM (B,S,D)
                   attn_ref):                # VMEM (L,B,S,H*S)
    B, S, D = x_ref.shape
    H, dk, dv = N_HEADS, D_K, D_V
    hd = dk + dk + dv            # per-head column span in head-major fused QKV

    # ---- positional encoding add (dropout == identity / eval mode) ----
    h = (x_ref[...] + pe_ref[...]).reshape(B * S, D)             # (B*S, D)

    # ---- additive pad-mask bias, built once (broadcast compare, no loops) ----
    # bias[b, q, k] = NEG_INF if k >= len[b] else 0
    kidx = lax.broadcasted_iota(jnp.int32, (B, S, S), 2)          # key position
    lens_b = lens_ref[...].reshape(B, 1, 1)                       # (B,1,1) int32
    bias = jnp.where(kidx >= lens_b,
                     jnp.float32(NEG_INF), jnp.float32(0.0))      # (B,S,S) f32

    # ---- encoder layers (static unrolled; weights stacked on layer axis) ----
    for l in range(N_LAYERS):
        ln_l = ln_ref[l]                                          # (4, D)
        g1, b1 = ln_l[0:1, :], ln_l[1:2, :]
        g2, b2 = ln_l[2:3, :], ln_l[3:4, :]

        # fused QKV projection: one MXU matmul produces Q,K,V for all heads.
        # Columns are head-major; 1/sqrt(d_k) is already folded into Q columns.
        qkv = jnp.dot(h, wqkv_ref[l],
                      preferred_element_type=jnp.float32)         # (B*S, H*hd)
        qkv3 = qkv.reshape(B, S, H * hd)

        attn_heads = []
        ctx_heads = []
        for hh in range(H):                                       # H static
            base = hh * hd
            qh = qkv3[:, :, base:base + dk]                       # (B,S,dk)
            kh = qkv3[:, :, base + dk:base + 2 * dk]              # (B,S,dk)
            vh = qkv3[:, :, base + 2 * dk:base + 2 * dk + dv]     # (B,S,dv)

            sc = jnp.einsum('bqd,bkd->bqk', qh, kh,
                            preferred_element_type=jnp.float32) + bias
            m = jnp.max(sc, axis=-1, keepdims=True)
            e = jnp.exp(sc - m)
            denom = jnp.sum(e, axis=-1, keepdims=True)
            # approx=True (EUP vrcp) risks the 1e-4 check on attn; keep exact.
            attn = e * pl.reciprocal(denom, approx=False)         # (B,S,S)
            attn_heads.append(attn)
            ctx_heads.append(jnp.einsum('bqk,bkd->bqd', attn, vh,
                                        preferred_element_type=jnp.float32))

        # one lane-dense store per layer instead of 4 masked 8-lane stores
        attn_ref[l] = jnp.concatenate(attn_heads, axis=-1)        # (B,S,H*S)
        ctx_all = jnp.concatenate(ctx_heads, axis=-1).reshape(B * S, H * dv)

        # output projection + add & norm
        mha = jnp.dot(ctx_all, wo_ref[l],
                      preferred_element_type=jnp.float32)         # (B*S, D)
        y = _layernorm(mha + h, g1, b1)

        # position-wise feed-forward + add & norm
        hid = jnp.maximum(
            jnp.dot(y, w1_ref[l], preferred_element_type=jnp.float32), 0.0)
        ffn = jnp.dot(hid, w2_ref[l], preferred_element_type=jnp.float32)
        h = _layernorm(ffn + y, g2, b2)

    out_ref[...] = h.reshape(B, S, D)


# ------------------------------ wrapper ---------------------------------------
def encoder_forward(enc_inputs, len_inputs, pe, packed_params):
    """enc_inputs: [B, S, D_MODEL] f32; len_inputs: python list of ints."""
    B, S, D = enc_inputs.shape
    wqkv, wo, w1, w2, ln = packed_params
    lens = jnp.asarray(np.asarray(len_inputs, dtype=np.int32)).reshape(B, 1)

    vmem = pl.BlockSpec(memory_space=pltpu.MemorySpace.VMEM)

    # advisory scheduling hint for XLA around the custom call
    flops = N_LAYERS * (2 * B * S * D * (N_HEADS * (D_Q + D_K + D_V))   # QKV
                        + 2 * B * N_HEADS * S * S * D_K * 2             # attn
                        + 2 * B * S * (N_HEADS * D_V) * D               # W_O
                        + 2 * B * S * D * D_FF * 2)                     # FFN
    transcendentals = N_LAYERS * (N_HEADS * B * S * S      # exp
                                  + N_HEADS * B * S        # reciprocal
                                  + 2 * B * S)             # rsqrt
    bytes_accessed = 4 * (enc_inputs.size + S * D + wqkv.size + wo.size
                          + w1.size + w2.size + ln.size + lens.size
                          + B * S * D + N_LAYERS * B * S * N_HEADS * S)

    out, attn_packed = pl.pallas_call(
        encoder_kernel,
        out_shape=(jax.ShapeDtypeStruct((B, S, D), jnp.float32),
                   jax.ShapeDtypeStruct((N_LAYERS, B, S, N_HEADS * S),
                                        jnp.float32)),
        in_specs=[vmem] * 8,     # lens, x, pe, wqkv, wo, w1, w2, ln
        out_specs=(vmem, vmem),
        cost_estimate=pl.CostEstimate(flops=flops,
                                      transcendentals=transcendentals,
                                      bytes_accessed=bytes_accessed),
    )(lens, enc_inputs, pe[:S], wqkv, wo, w1, w2, ln)

    # layout plumbing on a ~4 KiB tensor: (L,B,S,H*S) -> per-layer (B,H,S,S)
    attn5 = attn_packed.reshape(N_LAYERS, B, S, N_HEADS, S).transpose(0, 1, 3, 2, 4)
    attns = [attn5[l] for l in range(N_LAYERS)]
    return out, attns


# --------------------------- parameter construction --------------------------
def make_pe(max_len, d_model):
    pe = np.zeros((max_len, d_model), dtype=np.float32)
    position = np.arange(0, max_len, dtype=np.float32)[:, None]
    div_term = np.exp(np.arange(0, d_model, 2, dtype=np.float32)
                      * (-math.log(10000.0) / d_model))
    pe[:, 0::2] = np.sin(position * div_term)
    pe[:, 1::2] = np.cos(position * div_term)
    return jnp.asarray(pe)


def make_layer_params(key):
    ks = jax.random.split(key, 10)

    def lin(k, fan_in, fan_out):
        return (jax.random.normal(k, (fan_in, fan_out), jnp.float32)
                / np.sqrt(fan_in)).astype(jnp.float32)

    wq = lin(ks[0], D_MODEL, N_HEADS * D_Q)
    wk = lin(ks[1], D_MODEL, N_HEADS * D_K)
    wv = lin(ks[2], D_MODEL, N_HEADS * D_V)
    wo = lin(ks[3], N_HEADS * D_V, D_MODEL)
    w1 = lin(ks[4], D_MODEL, D_FF)
    w2 = lin(ks[5], D_FF, D_MODEL)
    g1 = 1.0 + 0.1 * jax.random.normal(ks[6], (1, D_MODEL), jnp.float32)
    b1 = 0.1 * jax.random.normal(ks[7], (1, D_MODEL), jnp.float32)
    g2 = 1.0 + 0.1 * jax.random.normal(ks[8], (1, D_MODEL), jnp.float32)
    b2 = 0.1 * jax.random.normal(ks[9], (1, D_MODEL), jnp.float32)
    return (wq, wk, wv, wo, g1, b1, w1, w2, g2, b2)


def pack_params(layers_params):
    """Stack per-layer weights on a leading layer axis.

    The fused QKV weight is packed HEAD-MAJOR (each head's q|k|v columns are
    contiguous) and the 1/sqrt(d_k) attention scale is folded into the Q
    columns (one-time host cost; removes a per-head in-kernel multiply).
    """
    scale = 1.0 / math.sqrt(D_K)

    def fuse_qkv(wq, wk, wv):
        wq = wq * scale
        cols = []
        for hh in range(N_HEADS):
            cols.append(wq[:, hh * D_Q:(hh + 1) * D_Q])
            cols.append(wk[:, hh * D_K:(hh + 1) * D_K])
            cols.append(wv[:, hh * D_V:(hh + 1) * D_V])
        return jnp.concatenate(cols, axis=1)            # (D, H*(dq+dk+dv))

    wqkv = jnp.stack([fuse_qkv(p[0], p[1], p[2]) for p in layers_params])
    wo = jnp.stack([p[3] for p in layers_params])        # (L, H*dv, D)
    w1 = jnp.stack([p[6] for p in layers_params])        # (L, D, D_FF)
    w2 = jnp.stack([p[7] for p in layers_params])        # (L, D_FF, D)
    ln = jnp.stack([jnp.concatenate([p[4], p[5], p[8], p[9]], axis=0)
                    for p in layers_params])             # (L, 4, D)
    return (wqkv, wo, w1, w2, ln)


# --------------------------- pure-JAX reference -------------------------------
def ref_forward(x, len_inputs, pe, layers_params):
    B, S, D = x.shape
    h = x + pe[:S][None]
    mask_np = np.array([[0] * l + [1] * (S - l) for l in len_inputs], dtype=bool)
    mask = np.broadcast_to(mask_np[:, None, :], (B, S, S))
    attns = []
    for (wq, wk, wv, wo, g1, b1, w1, w2, g2, b2) in layers_params:
        q = (h @ wq).reshape(B, S, N_HEADS, D_Q).transpose(0, 2, 1, 3)
        k = (h @ wk).reshape(B, S, N_HEADS, D_K).transpose(0, 2, 1, 3)
        v = (h @ wv).reshape(B, S, N_HEADS, D_V).transpose(0, 2, 1, 3)
        scores = jnp.einsum('bhqd,bhkd->bhqk', q, k) / np.sqrt(D_K)
        scores = jnp.where(mask[:, None, :, :], NEG_INF, scores)
        attn = jax.nn.softmax(scores, axis=-1)
        ctx = jnp.einsum('bhqk,bhkd->bhqd', attn, v)
        ctx = ctx.transpose(0, 2, 1, 3).reshape(B, S, N_HEADS * D_V)
        o = ctx @ wo + h
        mu = o.mean(-1, keepdims=True)
        var = ((o - mu) ** 2).mean(-1, keepdims=True)
        y = (o - mu) / jnp.sqrt(var + LN_EPS) * g1[0] + b1[0]
        f = jnp.maximum(y @ w1, 0.0) @ w2 + y
        mu = f.mean(-1, keepdims=True)
        var = ((f - mu) ** 2).mean(-1, keepdims=True)
        h = (f - mu) / jnp.sqrt(var + LN_EPS) * g2[0] + b2[0]
        attns.append(attn)
    return h, attns


# ------------------------------------ main ------------------------------------
if __name__ == "__main__":
    B, S = 2, 8
    len_inputs = [8, 5]                   # per-example valid lengths (max == S)
    MAX_LEN = 16

    key = jax.random.PRNGKey(0)
    k_in, *k_layers = jax.random.split(key, 1 + N_LAYERS)
    enc_inputs = jax.random.normal(k_in, (B, S, D_MODEL), jnp.float32)
    pe = make_pe(MAX_LEN, D_MODEL)
    layers_params = [make_layer_params(k) for k in k_layers]
    packed = pack_params(layers_params)

    out, attns = encoder_forward(enc_inputs, len_inputs, pe, packed)
    out = jax.block_until_ready(out)
    attns = [jax.block_until_ready(a) for a in attns]

    out_ref, attns_ref = ref_forward(enc_inputs, len_inputs, pe, layers_params)
    np.testing.assert_allclose(np.asarray(out), np.asarray(out_ref),
                               rtol=1e-4, atol=1e-4)
    for a, ar in zip(attns, attns_ref):
        np.testing.assert_allclose(np.asarray(a), np.asarray(ar),
                                   rtol=1e-4, atol=1e-4)

    print("KERNEL_OK")
</pallas_src>

<mosaic_0001>
module attributes {stable_mosaic.version = 11 : i64} {
  func.func @encoder_kernel(%arg0: memref<2x1xi32, #tpu.memory_space<vmem>>, %arg1: memref<2x8x32xf32, #tpu.memory_space<vmem>>, %arg2: memref<8x32xf32, #tpu.memory_space<vmem>>, %arg3: memref<2x32x96xf32, #tpu.memory_space<vmem>>, %arg4: memref<2x32x32xf32, #tpu.memory_space<vmem>>, %arg5: memref<2x32x64xf32, #tpu.memory_space<vmem>>, %arg6: memref<2x64x32xf32, #tpu.memory_space<vmem>>, %arg7: memref<2x4x32xf32, #tpu.memory_space<vmem>>, %arg8: memref<2x8x32xf32, #tpu.memory_space<vmem>>, %arg9: memref<2x2x8x32xf32, #tpu.memory_space<vmem>>) attributes {dimension_semantics = [], scalar_prefetch = 0 : i64, scratch_operands = 0 : i64, tpu.core_type = #tpu.core_type<tc>} {
    %c0 = arith.constant 0 : index
    %c0_0 = arith.constant 0 : index
    %c0_1 = arith.constant 0 : index
    %0 = vector.load %arg1[%c0, %c0_0, %c0_1] : memref<2x8x32xf32, #tpu.memory_space<vmem>>, vector<2x8x32xf32>
    %c0_2 = arith.constant 0 : index
    %c0_3 = arith.constant 0 : index
    %1 = vector.load %arg2[%c0_2, %c0_3] : memref<8x32xf32, #tpu.memory_space<vmem>>, vector<8x32xf32>
    %2 = vector.shape_cast %1 : vector<8x32xf32> to vector<1x8x32xf32>
    %3 = vector.broadcast %2 : vector<1x8x32xf32> to vector<2x8x32xf32>
    %4 = arith.addf %0, %3 : vector<2x8x32xf32>
    %5 = vector.shape_cast %4 : vector<2x8x32xf32> to vector<16x32xf32>
    %6 = tpu.iota {dimensions = array<i32: 2>} : vector<2x8x8xi32>
    %c0_4 = arith.constant 0 : index
    %c0_5 = arith.constant 0 : index
    %7 = vector.load %arg0[%c0_4, %c0_5] : memref<2x1xi32, #tpu.memory_space<vmem>>, vector<2x1xi32>
    %8 = vector.shape_cast %7 : vector<2x1xi32> to vector<2x1x1xi32>
    %9 = vector.broadcast %8 : vector<2x1x1xi32> to vector<2x8x8xi32>
    %10 = arith.cmpi sge, %6, %9 : vector<2x8x8xi32>
    %cst = arith.constant -1.000000e+09 : f32
    %cst_6 = arith.constant 0.000000e+00 : f32
    %11 = vector.broadcast %cst : f32 to vector<2x8x8xf32>
    %12 = vector.broadcast %cst_6 : f32 to vector<2x8x8xf32>
    %13 = arith.select %10, %11, %12 : vector<2x8x8xi1>, vector<2x8x8xf32>
    %c0_7 = arith.constant 0 : index
    %c0_8 = arith.constant 0 : index
    %c0_9 = arith.constant 0 : index
    %14 = vector.load %arg7[%c0_7, %c0_8, %c0_9] : memref<2x4x32xf32, #tpu.memory_space<vmem>>, vector<1x4x32xf32>
    %15 = vector.shape_cast %14 : vector<1x4x32xf32> to vector<4x32xf32>
    %16 = vector.extract_strided_slice %15 {offsets = [0, 0], sizes = [1, 32], strides = [1, 1]} : vector<4x32xf32> to vector<1x32xf32>
    %17 = vector.extract_strided_slice %15 {offsets = [1, 0], sizes = [1, 32], strides = [1, 1]} : vector<4x32xf32> to vector<1x32xf32>
    %18 = vector.extract_strided_slice %15 {offsets = [2, 0], sizes = [1, 32], strides = [1, 1]} : vector<4x32xf32> to vector<1x32xf32>
    %19 = vector.extract_strided_slice %15 {offsets = [3, 0], sizes = [1, 32], strides = [1, 1]} : vector<4x32xf32> to vector<1x32xf32>
    %c0_10 = arith.constant 0 : index
    %c0_11 = arith.constant 0 : index
    %c0_12 = arith.constant 0 : index
    %20 = vector.load %arg3[%c0_10, %c0_11, %c0_12] : memref<2x32x96xf32, #tpu.memory_space<vmem>>, vector<1x32x96xf32>
    %21 = vector.shape_cast %20 : vector<1x32x96xf32> to vector<32x96xf32>
    %cst_13 = arith.constant dense<0.000000e+00> : vector<16x96xf32>
    %22 = tpu.matmul %5, %21, %cst_13 {dimension_numbers = #tpu.dot_dimension_numbers<[1], [0], [0], [1], [0, 0, 1, 1], [], []>} : vector<16x32xf32>, vector<32x96xf32>, vector<16x96xf32> -> vector<16x96xf32>
    %23 = vector.shape_cast %22 : vector<16x96xf32> to vector<2x8x96xf32>
    %24 = vector.extract_strided_slice %23 {offsets = [0, 0, 0], sizes = [2, 8, 8], strides = [1, 1, 1]} : vector<2x8x96xf32> to vector<2x8x8xf32>
    %25 = vector.extract_strided_slice %23 {offsets = [0, 0, 8], sizes = [2, 8, 8], strides = [1, 1, 1]} : vector<2x8x96xf32> to vector<2x8x8xf32>
    %26 = vector.extract_strided_slice %23 {offsets = [0, 0, 16], sizes = [2, 8, 8], strides = [1, 1, 1]} : vector<2x8x96xf32> to vector<2x8x8xf32>
    "tpu.trace_start"() <{level = 10 : i32, message = "bqd,bkd->bqk"}> : () -> ()
    %cst_14 = arith.constant dense<0.000000e+00> : vector<2x8x8xf32>
    %27 = tpu.matmul %24, %25, %cst_14 {dimension_numbers = #tpu.dot_dimension_numbers<[2], [2], [1], [1], [0, 0, 0, 1, 1, 1], [0], [0]>} : vector<2x8x8xf32>, vector<2x8x8xf32>, vector<2x8x8xf32> -> vector<2x8x8xf32>
    "tpu.trace_stop"() : () -> ()
    %28 = arith.addf %27, %13 : vector<2x8x8xf32>
    %cst_15 = arith.constant dense<0xFF800000> : vector<2x8xf32>
    %29 = vector.multi_reduction <maximumf>, %28, %cst_15 [2] : vector<2x8x8xf32> to vector<2x8xf32>
    %30 = vector.shape_cast %29 : vector<2x8xf32> to vector<2x8x1xf32>
    %31 = vector.broadcast %30 : vector<2x8x1xf32> to vector<2x8x8xf32>
    %32 = arith.subf %28, %31 : vector<2x8x8xf32>
    %33 = math.exp %32 : vector<2x8x8xf32>
    %cst_16 = arith.constant dense<0.000000e+00> : vector<2x8xf32>
    %34 = vector.multi_reduction <add>, %33, %cst_16 [2] : vector<2x8x8xf32> to vector<2x8xf32>
    %35 = vector.shape_cast %34 : vector<2x8xf32> to vector<2x8x1xf32>
    %36 = tpu.reciprocal %35 : vector<2x8x1xf32> -> vector<2x8x1xf32>
    %37 = vector.broadcast %36 : vector<2x8x1xf32> to vector<2x8x8xf32>
    %38 = arith.mulf %33, %37 : vector<2x8x8xf32>
    "tpu.trace_start"() <{level = 10 : i32, message = "bqk,bkd->bqd"}> : () -> ()
    %cst_17 = arith.constant dense<0.000000e+00> : vector<2x8x8xf32>
    %39 = tpu.matmul %38, %26, %cst_17 {dimension_numbers = #tpu.dot_dimension_numbers<[2], [1], [1], [2], [0, 0, 0, 1, 1, 2], [0], [0]>} : vector<2x8x8xf32>, vector<2x8x8xf32>, vector<2x8x8xf32> -> vector<2x8x8xf32>
    "tpu.trace_stop"() : () -> ()
    %40 = vector.extract_strided_slice %23 {offsets = [0, 0, 24], sizes = [2, 8, 8], strides = [1, 1, 1]} : vector<2x8x96xf32> to vector<2x8x8xf32>
    %41 = vector.extract_strided_slice %23 {offsets = [0, 0, 32], sizes = [2, 8, 8], strides = [1, 1, 1]} : vector<2x8x96xf32> to vector<2x8x8xf32>
    %42 = vector.extract_strided_slice %23 {offsets = [0, 0, 40], sizes = [2, 8, 8], strides = [1, 1, 1]} : vector<2x8x96xf32> to vector<2x8x8xf32>
    "tpu.trace_start"() <{level = 10 : i32, message = "bqd,bkd->bqk"}> : () -> ()
    %cst_18 = arith.constant dense<0.000000e+00> : vector<2x8x8xf32>
    %43 = tpu.matmul %40, %41, %cst_18 {dimension_numbers = #tpu.dot_dimension_numbers<[2], [2], [1], [1], [0, 0, 0, 1, 1, 1], [0], [0]>} : vector<2x8x8xf32>, vector<2x8x8xf32>, vector<2x8x8xf32> -> vector<2x8x8xf32>
    "tpu.trace_stop"() : () -> ()
    %44 = arith.addf %43, %13 : vector<2x8x8xf32>
    %cst_19 = arith.constant dense<0xFF800000> : vector<2x8xf32>
    %45 = vector.multi_reduction <maximumf>, %44, %cst_19 [2] : vector<2x8x8xf32> to vector<2x8xf32>
    %46 = vector.shape_cast %45 : vector<2x8xf32> to vector<2x8x1xf32>
    %47 = vector.broadcast %46 : vector<2x8x1xf32> to vector<2x8x8xf32>
    %48 = arith.subf %44, %47 : vector<2x8x8xf32>
    %49 = math.exp %48 : vector<2x8x8xf32>
    %cst_20 = arith.constant dense<0.000000e+00> : vector<2x8xf32>
    %50 = vector.multi_reduction <add>, %49, %cst_20 [2] : vector<2x8x8xf32> to vector<2x8xf32>
    %51 = vector.shape_cast %50 : vector<2x8xf32> to vector<2x8x1xf32>
    %52 = tpu.reciprocal %51 : vector<2x8x1xf32> -> vector<2x8x1xf32>
    %53 = vector.broadcast %52 : vector<2x8x1xf32> to vector<2x8x8xf32>
    %54 = arith.mulf %49, %53 : vector<2x8x8xf32>
    "tpu.trace_start"() <{level = 10 : i32, message = "bqk,bkd->bqd"}> : () -> ()
    %cst_21 = arith.constant dense<0.000000e+00> : vector<2x8x8xf32>
    %55 = tpu.matmul %54, %42, %cst_21 {dimension_numbers = #tpu.dot_dimension_numbers<[2], [1], [1], [2], [0, 0, 0, 1, 1, 2], [0], [0]>} : vector<2x8x8xf32>, vector<2x8x8xf32>, vector<2x8x8xf32> -> vector<2x8x8xf32>
    "tpu.trace_stop"() : () -> ()
    %56 = vector.extract_strided_slice %23 {offsets = [0, 0, 48], sizes = [2, 8, 8], strides = [1, 1, 1]} : vector<2x8x96xf32> to vector<2x8x8xf32>
    %57 = vector.extract_strided_slice %23 {offsets = [0, 0, 56], sizes = [2, 8, 8], strides = [1, 1, 1]} : vector<2x8x96xf32> to vector<2x8x8xf32>
    %58 = vector.extract_strided_slice %23 {offsets = [0, 0, 64], sizes = [2, 8, 8], strides = [1, 1, 1]} : vector<2x8x96xf32> to vector<2x8x8xf32>
    "tpu.trace_start"() <{level = 10 : i32, message = "bqd,bkd->bqk"}> : () -> ()
    %cst_22 = arith.constant dense<0.000000e+00> : vector<2x8x8xf32>
    %59 = tpu.matmul %56, %57, %cst_22 {dimension_numbers = #tpu.dot_dimension_numbers<[2], [2], [1], [1], [0, 0, 0, 1, 1, 1], [0], [0]>} : vector<2x8x8xf32>, vector<2x8x8xf32>, vector<2x8x8xf32> -> vector<2x8x8xf32>
    "tpu.trace_stop"() : () -> ()
    %60 = arith.addf %59, %13 : vector<2x8x8xf32>
    %cst_23 = arith.constant dense<0xFF800000> : vector<2x8xf32>
    %61 = vector.multi_reduction <maximumf>, %60, %cst_23 [2] : vector<2x8x8xf32> to vector<2x8xf32>
    %62 = vector.shape_cast %61 : vector<2x8xf32> to vector<2x8x1xf32>
    %63 = vector.broadcast %62 : vector<2x8x1xf32> to vector<2x8x8xf32>
    %64 = arith.subf %60, %63 : vector<2x8x8xf32>
    %65 = math.exp %64 : vector<2x8x8xf32>
    %cst_24 = arith.constant dense<0.000000e+00> : vector<2x8xf32>
    %66 = vector.multi_reduction <add>, %65, %cst_24 [2] : vector<2x8x8xf32> to vector<2x8xf32>
    %67 = vector.shape_cast %66 : vector<2x8xf32> to vector<2x8x1xf32>
    %68 = tpu.reciprocal %67 : vector<2x8x1xf32> -> vector<2x8x1xf32>
    %69 = vector.broadcast %68 : vector<2x8x1xf32> to vector<2x8x8xf32>
    %70 = arith.mulf %65, %69 : vector<2x8x8xf32>
    "tpu.trace_start"() <{level = 10 : i32, message = "bqk,bkd->bqd"}> : () -> ()
    %cst_25 = arith.constant dense<0.000000e+00> : vector<2x8x8xf32>
    %71 = tpu.matmul %70, %58, %cst_25 {dimension_numbers = #tpu.dot_dimension_numbers<[2], [1], [1], [2], [0, 0, 0, 1, 1, 2], [0], [0]>} : vector<2x8x8xf32>, vector<2x8x8xf32>, vector<2x8x8xf32> -> vector<2x8x8xf32>
    "tpu.trace_stop"() : () -> ()
    %72 = vector.extract_strided_slice %23 {offsets = [0, 0, 72], sizes = [2, 8, 8], strides = [1, 1, 1]} : vector<2x8x96xf32> to vector<2x8x8xf32>
    %73 = vector.extract_strided_slice %23 {offsets = [0, 0, 80], sizes = [2, 8, 8], strides = [1, 1, 1]} : vector<2x8x96xf32> to vector<2x8x8xf32>
    %74 = vector.extract_strided_slice %23 {offsets = [0, 0, 88], sizes = [2, 8, 8], strides = [1, 1, 1]} : vector<2x8x96xf32> to vector<2x8x8xf32>
    "tpu.trace_start"() <{level = 10 : i32, message = "bqd,bkd->bqk"}> : () -> ()
    %cst_26 = arith.constant dense<0.000000e+00> : vector<2x8x8xf32>
    %75 = tpu.matmul %72, %73, %cst_26 {dimension_numbers = #tpu.dot_dimension_numbers<[2], [2], [1], [1], [0, 0, 0, 1, 1, 1], [0], [0]>} : vector<2x8x8xf32>, vector<2x8x8xf32>, vector<2x8x8xf32> -> vector<2x8x8xf32>
    "tpu.trace_stop"() : () -> ()
    %76 = arith.addf %75, %13 : vector<2x8x8xf32>
    %cst_27 = arith.constant dense<0xFF800000> : vector<2x8xf32>
    %77 = vector.multi_reduction <maximumf>, %76, %cst_27 [2] : vector<2x8x8xf32> to vector<2x8xf32>
    %78 = vector.shape_cast %77 : vector<2x8xf32> to vector<2x8x1xf32>
    %79 = vector.broadcast %78 : vector<2x8x1xf32> to vector<2x8x8xf32>
    %80 = arith.subf %76, %79 : vector<2x8x8xf32>
    %81 = math.exp %80 : vector<2x8x8xf32>
    %cst_28 = arith.constant dense<0.000000e+00> : vector<2x8xf32>
    %82 = vector.multi_reduction <add>, %81, %cst_28 [2] : vector<2x8x8xf32> to vector<2x8xf32>
    %83 = vector.shape_cast %82 : vector<2x8xf32> to vector<2x8x1xf32>
    %84 = tpu.reciprocal %83 : vector<2x8x1xf32> -> vector<2x8x1xf32>
    %85 = vector.broadcast %84 : vector<2x8x1xf32> to vector<2x8x8xf32>
    %86 = arith.mulf %81, %85 : vector<2x8x8xf32>
    "tpu.trace_start"() <{level = 10 : i32, message = "bqk,bkd->bqd"}> : () -> ()
    %cst_29 = arith.constant dense<0.000000e+00> : vector<2x8x8xf32>
    %87 = tpu.matmul %86, %74, %cst_29 {dimension_numbers = #tpu.dot_dimension_numbers<[2], [1], [1], [2], [0, 0, 0, 1, 1, 2], [0], [0]>} : vector<2x8x8xf32>, vector<2x8x8xf32>, vector<2x8x8xf32> -> vector<2x8x8xf32>
    "tpu.trace_stop"() : () -> ()
    %88 = tpu.concatenate %38, %54, %70, %86 in 2 : vector<2x8x8xf32>, vector<2x8x8xf32>, vector<2x8x8xf32>, vector<2x8x8xf32> -> vector<2x8x32xf32>
    %c0_30 = arith.constant 0 : index
    %c0_31 = arith.constant 0 : index
    %c0_32 = arith.constant 0 : index
    %c0_33 = arith.constant 0 : index
    %89 = vector.load %arg9[%c0_30, %c0_31, %c0_32, %c0_33] : memref<2x2x8x32xf32, #tpu.memory_space<vmem>>, vector<1x2x8x32xf32>
    %90 = vector.shape_cast %89 : vector<1x2x8x32xf32> to vector<2x8x32xf32>
    %91 = vector.shape_cast %88 : vector<2x8x32xf32> to vector<1x2x8x32xf32>
    tpu.vector_store %arg9[%c0_30, %c0_31, %c0_32, %c0_33], %91 {strides = array<i32>} : memref<2x2x8x32xf32, #tpu.memory_space<vmem>>, vector<1x2x8x32xf32>,
    %92 = tpu.concatenate %39, %55, %71, %87 in 2 : vector<2x8x8xf32>, vector<2x8x8xf32>, vector<2x8x8xf32>, vector<2x8x8xf32> -> vector<2x8x32xf32>
    %93 = vector.shape_cast %92 : vector<2x8x32xf32> to vector<16x32xf32>
    %c0_34 = arith.constant 0 : index
    %c0_35 = arith.constant 0 : index
    %c0_36 = arith.constant 0 : index
    %94 = vector.load %arg4[%c0_34, %c0_35, %c0_36] : memref<2x32x32xf32, #tpu.memory_space<vmem>>, vector<1x32x32xf32>
    %95 = vector.shape_cast %94 : vector<1x32x32xf32> to vector<32x32xf32>
    %cst_37 = arith.constant dense<0.000000e+00> : vector<16x32xf32>
    %96 = tpu.matmul %93, %95, %cst_37 {dimension_numbers = #tpu.dot_dimension_numbers<[1], [0], [0], [1], [0, 0, 1, 1], [], []>} : vector<16x32xf32>, vector<32x32xf32>, vector<16x32xf32> -> vector<16x32xf32>
    %97 = arith.addf %96, %5 : vector<16x32xf32>
    %cst_38 = arith.constant dense<0.000000e+00> : vector<16xf32>
    %98 = vector.multi_reduction <add>, %97, %cst_38 [1] : vector<16x32xf32> to vector<16xf32>
    %99 = vector.shape_cast %98 : vector<16xf32> to vector<16x1xf32>
    %cst_39 = arith.constant 3.200000e+01 : f32
    %100 = vector.broadcast %cst_39 : f32 to vector<16x1xf32>
    %101 = arith.divf %99, %100 : vector<16x1xf32>
    %102 = arith.mulf %97, %97 : vector<16x32xf32>
    %cst_40 = arith.constant dense<0.000000e+00> : vector<16xf32>
    %103 = vector.multi_reduction <add>, %102, %cst_40 [1] : vector<16x32xf32> to vector<16xf32>
    %104 = vector.shape_cast %103 : vector<16xf32> to vector<16x1xf32>
    %cst_41 = arith.constant 3.200000e+01 : f32
    %105 = vector.broadcast %cst_41 : f32 to vector<16x1xf32>
    %106 = arith.divf %104, %105 : vector<16x1xf32>
    %107 = arith.mulf %101, %101 : vector<16x1xf32>
    %108 = arith.subf %106, %107 : vector<16x1xf32>
    %109 = vector.broadcast %101 : vector<16x1xf32> to vector<16x32xf32>
    %110 = arith.subf %97, %109 : vector<16x32xf32>
    %cst_42 = arith.constant 9.99999974E-6 : f32
    %111 = vector.broadcast %cst_42 : f32 to vector<16x1xf32>
    %112 = arith.addf %108, %111 : vector<16x1xf32>
    %113 = math.rsqrt %112 : vector<16x1xf32>
    %114 = vector.broadcast %113 : vector<16x1xf32> to vector<16x32xf32>
    %115 = arith.mulf %110, %114 : vector<16x32xf32>
    %116 = vector.broadcast %16 : vector<1x32xf32> to vector<16x32xf32>
    %117 = arith.mulf %115, %116 : vector<16x32xf32>
    %118 = vector.broadcast %17 : vector<1x32xf32> to vector<16x32xf32>
    %119 = arith.addf %117, %118 : vector<16x32xf32>
    %c0_43 = arith.constant 0 : index
    %c0_44 = arith.constant 0 : index
    %c0_45 = arith.constant 0 : index
    %120 = vector.load %arg5[%c0_43, %c0_44, %c0_45] : memref<2x32x64xf32, #tpu.memory_space<vmem>>, vector<1x32x64xf32>
    %121 = vector.shape_cast %120 : vector<1x32x64xf32> to vector<32x64xf32>
    %cst_46 = arith.constant dense<0.000000e+00> : vector<16x64xf32>
    %122 = tpu.matmul %119, %121, %cst_46 {dimension_numbers = #tpu.dot_dimension_numbers<[1], [0], [0], [1], [0, 0, 1, 1], [], []>} : vector<16x32xf32>, vector<32x64xf32>, vector<16x64xf32> -> vector<16x64xf32>
    %cst_47 = arith.constant 0.000000e+00 : f32
    %123 = vector.broadcast %cst_47 : f32 to vector<16x64xf32>
    %124 = arith.maximumf %122, %123 : vector<16x64xf32>
    %c0_48 = arith.constant 0 : index
    %c0_49 = arith.constant 0 : index
    %c0_50 = arith.constant 0 : index
    %125 = vector.load %arg6[%c0_48, %c0_49, %c0_50] : memref<2x64x32xf32, #tpu.memory_space<vmem>>, vector<1x64x32xf32>
    %126 = vector.shape_cast %125 : vector<1x64x32xf32> to vector<64x32xf32>
    %cst_51 = arith.constant dense<0.000000e+00> : vector<16x32xf32>
    %127 = tpu.matmul %124, %126, %cst_51 {dimension_numbers = #tpu.dot_dimension_numbers<[1], [0], [0], [1], [0, 0, 1, 1], [], []>} : vector<16x64xf32>, vector<64x32xf32>, vector<16x32xf32> -> vector<16x32xf32>
    %128 = arith.addf %127, %119 : vector<16x32xf32>
    %cst_52 = arith.constant dense<0.000000e+00> : vector<16xf32>
    %129 = vector.multi_reduction <add>, %128, %cst_52 [1] : vector<16x32xf32> to vector<16xf32>
    %130 = vector.shape_cast %129 : vector<16xf32> to vector<16x1xf32>
    %cst_53 = arith.constant 3.200000e+01 : f32
    %131 = vector.broadcast %cst_53 : f32 to vector<16x1xf32>
    %132 = arith.divf %130, %131 : vector<16x1xf32>
    %133 = arith.mulf %128, %128 : vector<16x32xf32>
    %cst_54 = arith.constant dense<0.000000e+00> : vector<16xf32>
    %134 = vector.multi_reduction <add>, %133, %cst_54 [1] : vector<16x32xf32> to vector<16xf32>
    %135 = vector.shape_cast %134 : vector<16xf32> to vector<16x1xf32>
    %cst_55 = arith.constant 3.200000e+01 : f32
    %136 = vector.broadcast %cst_55 : f32 to vector<16x1xf32>
    %137 = arith.divf %135, %136 : vector<16x1xf32>
    %138 = arith.mulf %132, %132 : vector<16x1xf32>
    %139 = arith.subf %137, %138 : vector<16x1xf32>
    %140 = vector.broadcast %132 : vector<16x1xf32> to vector<16x32xf32>
    %141 = arith.subf %128, %140 : vector<16x32xf32>
    %cst_56 = arith.constant 9.99999974E-6 : f32
    %142 = vector.broadcast %cst_56 : f32 to vector<16x1xf32>
    %143 = arith.addf %139, %142 : vector<16x1xf32>
    %144 = math.rsqrt %143 : vector<16x1xf32>
    %145 = vector.broadcast %144 : vector<16x1xf32> to vector<16x32xf32>
    %146 = arith.mulf %141, %145 : vector<16x32xf32>
    %147 = vector.broadcast %18 : vector<1x32xf32> to vector<16x32xf32>
    %148 = arith.mulf %146, %147 : vector<16x32xf32>
    %149 = vector.broadcast %19 : vector<1x32xf32> to vector<16x32xf32>
    %150 = arith.addf %148, %149 : vector<16x32xf32>
    %c1 = arith.constant 1 : index
    %c0_57 = arith.constant 0 : index
    %c0_58 = arith.constant 0 : index
    %151 = vector.load %arg7[%c1, %c0_57, %c0_58] : memref<2x4x32xf32, #tpu.memory_space<vmem>>, vector<1x4x32xf32>
    %152 = vector.shape_cast %151 : vector<1x4x32xf32> to vector<4x32xf32>
    %153 = vector.extract_strided_slice %152 {offsets = [0, 0], sizes = [1, 32], strides = [1, 1]} : vector<4x32xf32> to vector<1x32xf32>
    %154 = vector.extract_strided_slice %152 {offsets = [1, 0], sizes = [1, 32], strides = [1, 1]} : vector<4x32xf32> to vector<1x32xf32>
    %155 = vector.extract_strided_slice %152 {offsets = [2, 0], sizes = [1, 32], strides = [1, 1]} : vector<4x32xf32> to vector<1x32xf32>
    %156 = vector.extract_strided_slice %152 {offsets = [3, 0], sizes = [1, 32], strides = [1, 1]} : vector<4x32xf32> to vector<1x32xf32>
    %c1_59 = arith.constant 1 : index
    %c0_60 = arith.constant 0 : index
    %c0_61 = arith.constant 0 : index
    %157 = vector.load %arg3[%c1_59, %c0_60, %c0_61] : memref<2x32x96xf32, #tpu.memory_space<vmem>>, vector<1x32x96xf32>
    %158 = vector.shape_cast %157 : vector<1x32x96xf32> to vector<32x96xf32>
    %cst_62 = arith.constant dense<0.000000e+00> : vector<16x96xf32>
    %159 = tpu.matmul %150, %158, %cst_62 {dimension_numbers = #tpu.dot_dimension_numbers<[1], [0], [0], [1], [0, 0, 1, 1], [], []>} : vector<16x32xf32>, vector<32x96xf32>, vector<16x96xf32> -> vector<16x96xf32>
    %160 = vector.shape_cast %159 : vector<16x96xf32> to vector<2x8x96xf32>
    %161 = vector.extract_strided_slice %160 {offsets = [0, 0, 0], sizes = [2, 8, 8], strides = [1, 1, 1]} : vector<2x8x96xf32> to vector<2x8x8xf32>
    %162 = vector.extract_strided_slice %160 {offsets = [0, 0, 8], sizes = [2, 8, 8], strides = [1, 1, 1]} : vector<2x8x96xf32> to vector<2x8x8xf32>
    %163 = vector.extract_strided_slice %160 {offsets = [0, 0, 16], sizes = [2, 8, 8], strides = [1, 1, 1]} : vector<2x8x96xf32> to vector<2x8x8xf32>
    "tpu.trace_start"() <{level = 10 : i32, message = "bqd,bkd->bqk"}> : () -> ()
    %cst_63 = arith.constant dense<0.000000e+00> : vector<2x8x8xf32>
    %164 = tpu.matmul %161, %162, %cst_63 {dimension_numbers = #tpu.dot_dimension_numbers<[2], [2], [1], [1], [0, 0, 0, 1, 1, 1], [0], [0]>} : vector<2x8x8xf32>, vector<2x8x8xf32>, vector<2x8x8xf32> -> vector<2x8x8xf32>
    "tpu.trace_stop"() : () -> ()
    %165 = arith.addf %164, %13 : vector<2x8x8xf32>
    %cst_64 = arith.constant dense<0xFF800000> : vector<2x8xf32>
    %166 = vector.multi_reduction <maximumf>, %165, %cst_64 [2] : vector<2x8x8xf32> to vector<2x8xf32>
    %167 = vector.shape_cast %166 : vector<2x8xf32> to vector<2x8x1xf32>
    %168 = vector.broadcast %167 : vector<2x8x1xf32> to vector<2x8x8xf32>
    %169 = arith.subf %165, %168 : vector<2x8x8xf32>
    %170 = math.exp %169 : vector<2x8x8xf32>
    %cst_65 = arith.constant dense<0.000000e+00> : vector<2x8xf32>
    %171 = vector.multi_reduction <add>, %170, %cst_65 [2] : vector<2x8x8xf32> to vector<2x8xf32>
    %172 = vector.shape_cast %171 : vector<2x8xf32> to vector<2x8x1xf32>
    %173 = tpu.reciprocal %172 : vector<2x8x1xf32> -> vector<2x8x1xf32>
    %174 = vector.broadcast %173 : vector<2x8x1xf32> to vector<2x8x8xf32>
    %175 = arith.mulf %170, %174 : vector<2x8x8xf32>
    "tpu.trace_start"() <{level = 10 : i32, message = "bqk,bkd->bqd"}> : () -> ()
    %cst_66 = arith.constant dense<0.000000e+00> : vector<2x8x8xf32>
    %176 = tpu.matmul %175, %163, %cst_66 {dimension_numbers = #tpu.dot_dimension_numbers<[2], [1], [1], [2], [0, 0, 0, 1, 1, 2], [0], [0]>} : vector<2x8x8xf32>, vector<2x8x8xf32>, vector<2x8x8xf32> -> vector<2x8x8xf32>
    "tpu.trace_stop"() : () -> ()
    %177 = vector.extract_strided_slice %160 {offsets = [0, 0, 24], sizes = [2, 8, 8], strides = [1, 1, 1]} : vector<2x8x96xf32> to vector<2x8x8xf32>
    %178 = vector.extract_strided_slice %160 {offsets = [0, 0, 32], sizes = [2, 8, 8], strides = [1, 1, 1]} : vector<2x8x96xf32> to vector<2x8x8xf32>
    %179 = vector.extract_strided_slice %160 {offsets = [0, 0, 40], sizes = [2, 8, 8], strides = [1, 1, 1]} : vector<2x8x96xf32> to vector<2x8x8xf32>
    "tpu.trace_start"() <{level = 10 : i32, message = "bqd,bkd->bqk"}> : () -> ()
    %cst_67 = arith.constant dense<0.000000e+00> : vector<2x8x8xf32>
    %180 = tpu.matmul %177, %178, %cst_67 {dimension_numbers = #tpu.dot_dimension_numbers<[2], [2], [1], [1], [0, 0, 0, 1, 1, 1], [0], [0]>} : vector<2x8x8xf32>, vector<2x8x8xf32>, vector<2x8x8xf32> -> vector<2x8x8xf32>
    "tpu.trace_stop"() : () -> ()
    %181 = arith.addf %180, %13 : vector<2x8x8xf32>
    %cst_68 = arith.constant dense<0xFF800000> : vector<2x8xf32>
    %182 = vector.multi_reduction <maximumf>, %181, %cst_68 [2] : vector<2x8x8xf32> to vector<2x8xf32>
    %183 = vector.shape_cast %182 : vector<2x8xf32> to vector<2x8x1xf32>
    %184 = vector.broadcast %183 : vector<2x8x1xf32> to vector<2x8x8xf32>
    %185 = arith.subf %181, %184 : vector<2x8x8xf32>
    %186 = math.exp %185 : vector<2x8x8xf32>
    %cst_69 = arith.constant dense<0.000000e+00> : vector<2x8xf32>
    %187 = vector.multi_reduction <add>, %186, %cst_69 [2] : vector<2x8x8xf32> to vector<2x8xf32>
    %188 = vector.shape_cast %187 : vector<2x8xf32> to vector<2x8x1xf32>
    %189 = tpu.reciprocal %188 : vector<2x8x1xf32> -> vector<2x8x1xf32>
    %190 = vector.broadcast %189 : vector<2x8x1xf32> to vector<2x8x8xf32>
    %191 = arith.mulf %186, %190 : vector<2x8x8xf32>
    "tpu.trace_start"() <{level = 10 : i32, message = "bqk,bkd->bqd"}> : () -> ()
    %cst_70 = arith.constant dense<0.000000e+00> : vector<2x8x8xf32>
    %192 = tpu.matmul %191, %179, %cst_70 {dimension_numbers = #tpu.dot_dimension_numbers<[2], [1], [1], [2], [0, 0, 0, 1, 1, 2], [0], [0]>} : vector<2x8x8xf32>, vector<2x8x8xf32>, vector<2x8x8xf32> -> vector<2x8x8xf32>
    "tpu.trace_stop"() : () -> ()
    %193 = vector.extract_strided_slice %160 {offsets = [0, 0, 48], sizes = [2, 8, 8], strides = [1, 1, 1]} : vector<2x8x96xf32> to vector<2x8x8xf32>
    %194 = vector.extract_strided_slice %160 {offsets = [0, 0, 56], sizes = [2, 8, 8], strides = [1, 1, 1]} : vector<2x8x96xf32> to vector<2x8x8xf32>
    %195 = vector.extract_strided_slice %160 {offsets = [0, 0, 64], sizes = [2, 8, 8], strides = [1, 1, 1]} : vector<2x8x96xf32> to vector<2x8x8xf32>
    "tpu.trace_start"() <{level = 10 : i32, message = "bqd,bkd->bqk"}> : () -> ()
    %cst_71 = arith.constant dense<0.000000e+00> : vector<2x8x8xf32>
    %196 = tpu.matmul %193, %194, %cst_71 {dimension_numbers = #tpu.dot_dimension_numbers<[2], [2], [1], [1], [0, 0, 0, 1, 1, 1], [0], [0]>} : vector<2x8x8xf32>, vector<2x8x8xf32>, vector<2x8x8xf32> -> vector<2x8x8xf32>
    "tpu.trace_stop"() : () -> ()
    %197 = arith.addf %196, %13 : vector<2x8x8xf32>
    %cst_72 = arith.constant dense<0xFF800000> : vector<2x8xf32>
    %198 = vector.multi_reduction <maximumf>, %197, %cst_72 [2] : vector<2x8x8xf32> to vector<2x8xf32>
    %199 = vector.shape_cast %198 : vector<2x8xf32> to vector<2x8x1xf32>
    %200 = vector.broadcast %199 : vector<2x8x1xf32> to vector<2x8x8xf32>
    %201 = arith.subf %197, %200 : vector<2x8x8xf32>
    %202 = math.exp %201 : vector<2x8x8xf32>
    %cst_73 = arith.constant dense<0.000000e+00> : vector<2x8xf32>
    %203 = vector.multi_reduction <add>, %202, %cst_73 [2] : vector<2x8x8xf32> to vector<2x8xf32>
    %204 = vector.shape_cast %203 : vector<2x8xf32> to vector<2x8x1xf32>
    %205 = tpu.reciprocal %204 : vector<2x8x1xf32> -> vector<2x8x1xf32>
    %206 = vector.broadcast %205 : vector<2x8x1xf32> to vector<2x8x8xf32>
    %207 = arith.mulf %202, %206 : vector<2x8x8xf32>
    "tpu.trace_start"() <{level = 10 : i32, message = "bqk,bkd->bqd"}> : () -> ()
    %cst_74 = arith.constant dense<0.000000e+00> : vector<2x8x8xf32>
    %208 = tpu.matmul %207, %195, %cst_74 {dimension_numbers = #tpu.dot_dimension_numbers<[2], [1], [1], [2], [0, 0, 0, 1, 1, 2], [0], [0]>} : vector<2x8x8xf32>, vector<2x8x8xf32>, vector<2x8x8xf32> -> vector<2x8x8xf32>
    "tpu.trace_stop"() : () -> ()
    %209 = vector.extract_strided_slice %160 {offsets = [0, 0, 72], sizes = [2, 8, 8], strides = [1, 1, 1]} : vector<2x8x96xf32> to vector<2x8x8xf32>
    %210 = vector.extract_strided_slice %160 {offsets = [0, 0, 80], sizes = [2, 8, 8], strides = [1, 1, 1]} : vector<2x8x96xf32> to vector<2x8x8xf32>
    %211 = vector.extract_strided_slice %160 {offsets = [0, 0, 88], sizes = [2, 8, 8], strides = [1, 1, 1]} : vector<2x8x96xf32> to vector<2x8x8xf32>
    "tpu.trace_start"() <{level = 10 : i32, message = "bqd,bkd->bqk"}> : () -> ()
    %cst_75 = arith.constant dense<0.000000e+00> : vector<2x8x8xf32>
    %212 = tpu.matmul %209, %210, %cst_75 {dimension_numbers = #tpu.dot_dimension_numbers<[2], [2], [1], [1], [0, 0, 0, 1, 1, 1], [0], [0]>} : vector<2x8x8xf32>, vector<2x8x8xf32>, vector<2x8x8xf32> -> vector<2x8x8xf32>
    "tpu.trace_stop"() : () -> ()
    %213 = arith.addf %212, %13 : vector<2x8x8xf32>
    %cst_76 = arith.constant dense<0xFF800000> : vector<2x8xf32>
    %214 = vector.multi_reduction <maximumf>, %213, %cst_76 [2] : vector<2x8x8xf32> to vector<2x8xf32>
    %215 = vector.shape_cast %214 : vector<2x8xf32> to vector<2x8x1xf32>
    %216 = vector.broadcast %215 : vector<2x8x1xf32> to vector<2x8x8xf32>
    %217 = arith.subf %213, %216 : vector<2x8x8xf32>
    %218 = math.exp %217 : vector<2x8x8xf32>
    %cst_77 = arith.constant dense<0.000000e+00> : vector<2x8xf32>
    %219 = vector.multi_reduction <add>, %218, %cst_77 [2] : vector<2x8x8xf32> to vector<2x8xf32>
    %220 = vector.shape_cast %219 : vector<2x8xf32> to vector<2x8x1xf32>
    %221 = tpu.reciprocal %220 : vector<2x8x1xf32> -> vector<2x8x1xf32>
    %222 = vector.broadcast %221 : vector<2x8x1xf32> to vector<2x8x8xf32>
    %223 = arith.mulf %218, %222 : vector<2x8x8xf32>
    "tpu.trace_start"() <{level = 10 : i32, message = "bqk,bkd->bqd"}> : () -> ()
    %cst_78 = arith.constant dense<0.000000e+00> : vector<2x8x8xf32>
    %224 = tpu.matmul %223, %211, %cst_78 {dimension_numbers = #tpu.dot_dimension_numbers<[2], [1], [1], [2], [0, 0, 0, 1, 1, 2], [0], [0]>} : vector<2x8x8xf32>, vector<2x8x8xf32>, vector<2x8x8xf32> -> vector<2x8x8xf32>
    "tpu.trace_stop"() : () -> ()
    %225 = tpu.concatenate %175, %191, %207, %223 in 2 : vector<2x8x8xf32>, vector<2x8x8xf32>, vector<2x8x8xf32>, vector<2x8x8xf32> -> vector<2x8x32xf32>
    %c1_79 = arith.constant 1 : index
    %c0_80 = arith.constant 0 : index
    %c0_81 = arith.constant 0 : index
    %c0_82 = arith.constant 0 : index
    %226 = vector.load %arg9[%c1_79, %c0_80, %c0_81, %c0_82] : memref<2x2x8x32xf32, #tpu.memory_space<vmem>>, vector<1x2x8x32xf32>
    %227 = vector.shape_cast %226 : vector<1x2x8x32xf32> to vector<2x8x32xf32>
    %228 = vector.shape_cast %225 : vector<2x8x32xf32> to vector<1x2x8x32xf32>
    tpu.vector_store %arg9[%c1_79, %c0_80, %c0_81, %c0_82], %228 {strides = array<i32>} : memref<2x2x8x32xf32, #tpu.memory_space<vmem>>, vector<1x2x8x32xf32>,
    %229 = tpu.concatenate %176, %192, %208, %224 in 2 : vector<2x8x8xf32>, vector<2x8x8xf32>, vector<2x8x8xf32>, vector<2x8x8xf32> -> vector<2x8x32xf32>
    %230 = vector.shape_cast %229 : vector<2x8x32xf32> to vector<16x32xf32>
    %c1_83 = arith.constant 1 : index
    %c0_84 = arith.constant 0 : index
    %c0_85 = arith.constant 0 : index
    %231 = vector.load %arg4[%c1_83, %c0_84, %c0_85] : memref<2x32x32xf32, #tpu.memory_space<vmem>>, vector<1x32x32xf32>
    %232 = vector.shape_cast %231 : vector<1x32x32xf32> to vector<32x32xf32>
    %cst_86 = arith.constant dense<0.000000e+00> : vector<16x32xf32>
    %233 = tpu.matmul %230, %232, %cst_86 {dimension_numbers = #tpu.dot_dimension_numbers<[1], [0], [0], [1], [0, 0, 1, 1], [], []>} : vector<16x32xf32>, vector<32x32xf32>, vector<16x32xf32> -> vector<16x32xf32>
    %234 = arith.addf %233, %150 : vector<16x32xf32>
    %cst_87 = arith.constant dense<0.000000e+00> : vector<16xf32>
    %235 = vector.multi_reduction <add>, %234, %cst_87 [1] : vector<16x32xf32> to vector<16xf32>
    %236 = vector.shape_cast %235 : vector<16xf32> to vector<16x1xf32>
    %cst_88 = arith.constant 3.200000e+01 : f32
    %237 = vector.broadcast %cst_88 : f32 to vector<16x1xf32>
    %238 = arith.divf %236, %237 : vector<16x1xf32>
    %239 = arith.mulf %234, %234 : vector<16x32xf32>
    %cst_89 = arith.constant dense<0.000000e+00> : vector<16xf32>
    %240 = vector.multi_reduction <add>, %239, %cst_89 [1] : vector<16x32xf32> to vector<16xf32>
    %241 = vector.shape_cast %240 : vector<16xf32> to vector<16x1xf32>
    %cst_90 = arith.constant 3.200000e+01 : f32
    %242 = vector.broadcast %cst_90 : f32 to vector<16x1xf32>
    %243 = arith.divf %241, %242 : vector<16x1xf32>
    %244 = arith.mulf %238, %238 : vector<16x1xf32>
    %245 = arith.subf %243, %244 : vector<16x1xf32>
    %246 = vector.broadcast %238 : vector<16x1xf32> to vector<16x32xf32>
    %247 = arith.subf %234, %246 : vector<16x32xf32>
    %cst_91 = arith.constant 9.99999974E-6 : f32
    %248 = vector.broadcast %cst_91 : f32 to vector<16x1xf32>
    %249 = arith.addf %245, %248 : vector<16x1xf32>
    %250 = math.rsqrt %249 : vector<16x1xf32>
    %251 = vector.broadcast %250 : vector<16x1xf32> to vector<16x32xf32>
    %252 = arith.mulf %247, %251 : vector<16x32xf32>
    %253 = vector.broadcast %153 : vector<1x32xf32> to vector<16x32xf32>
    %254 = arith.mulf %252, %253 : vector<16x32xf32>
    %255 = vector.broadcast %154 : vector<1x32xf32> to vector<16x32xf32>
    %256 = arith.addf %254, %255 : vector<16x32xf32>
    %c1_92 = arith.constant 1 : index
    %c0_93 = arith.constant 0 : index
    %c0_94 = arith.constant 0 : index
    %257 = vector.load %arg5[%c1_92, %c0_93, %c0_94] : memref<2x32x64xf32, #tpu.memory_space<vmem>>, vector<1x32x64xf32>
    %258 = vector.shape_cast %257 : vector<1x32x64xf32> to vector<32x64xf32>
    %cst_95 = arith.constant dense<0.000000e+00> : vector<16x64xf32>
    %259 = tpu.matmul %256, %258, %cst_95 {dimension_numbers = #tpu.dot_dimension_numbers<[1], [0], [0], [1], [0, 0, 1, 1], [], []>} : vector<16x32xf32>, vector<32x64xf32>, vector<16x64xf32> -> vector<16x64xf32>
    %cst_96 = arith.constant 0.000000e+00 : f32
    %260 = vector.broadcast %cst_96 : f32 to vector<16x64xf32>
    %261 = arith.maximumf %259, %260 : vector<16x64xf32>
    %c1_97 = arith.constant 1 : index
    %c0_98 = arith.constant 0 : index
    %c0_99 = arith.constant 0 : index
    %262 = vector.load %arg6[%c1_97, %c0_98, %c0_99] : memref<2x64x32xf32, #tpu.memory_space<vmem>>, vector<1x64x32xf32>
    %263 = vector.shape_cast %262 : vector<1x64x32xf32> to vector<64x32xf32>
    %cst_100 = arith.constant dense<0.000000e+00> : vector<16x32xf32>
    %264 = tpu.matmul %261, %263, %cst_100 {dimension_numbers = #tpu.dot_dimension_numbers<[1], [0], [0], [1], [0, 0, 1, 1], [], []>} : vector<16x64xf32>, vector<64x32xf32>, vector<16x32xf32> -> vector<16x32xf32>
    %265 = arith.addf %264, %256 : vector<16x32xf32>
    %cst_101 = arith.constant dense<0.000000e+00> : vector<16xf32>
    %266 = vector.multi_reduction <add>, %265, %cst_101 [1] : vector<16x32xf32> to vector<16xf32>
    %267 = vector.shape_cast %266 : vector<16xf32> to vector<16x1xf32>
    %cst_102 = arith.constant 3.200000e+01 : f32
    %268 = vector.broadcast %cst_102 : f32 to vector<16x1xf32>
    %269 = arith.divf %267, %268 : vector<16x1xf32>
    %270 = arith.mulf %265, %265 : vector<16x32xf32>
    %cst_103 = arith.constant dense<0.000000e+00> : vector<16xf32>
    %271 = vector.multi_reduction <add>, %270, %cst_103 [1] : vector<16x32xf32> to vector<16xf32>
    %272 = vector.shape_cast %271 : vector<16xf32> to vector<16x1xf32>
    %cst_104 = arith.constant 3.200000e+01 : f32
    %273 = vector.broadcast %cst_104 : f32 to vector<16x1xf32>
    %274 = arith.divf %272, %273 : vector<16x1xf32>
    %275 = arith.mulf %269, %269 : vector<16x1xf32>
    %276 = arith.subf %274, %275 : vector<16x1xf32>
    %277 = vector.broadcast %269 : vector<16x1xf32> to vector<16x32xf32>
    %278 = arith.subf %265, %277 : vector<16x32xf32>
    %cst_105 = arith.constant 9.99999974E-6 : f32
    %279 = vector.broadcast %cst_105 : f32 to vector<16x1xf32>
    %280 = arith.addf %276, %279 : vector<16x1xf32>
    %281 = math.rsqrt %280 : vector<16x1xf32>
    %282 = vector.broadcast %281 : vector<16x1xf32> to vector<16x32xf32>
    %283 = arith.mulf %278, %282 : vector<16x32xf32>
    %284 = vector.broadcast %155 : vector<1x32xf32> to vector<16x32xf32>
    %285 = arith.mulf %283, %284 : vector<16x32xf32>
    %286 = vector.broadcast %156 : vector<1x32xf32> to vector<16x32xf32>
    %287 = arith.addf %285, %286 : vector<16x32xf32>
    %288 = vector.shape_cast %287 : vector<16x32xf32> to vector<2x8x32xf32>
    %c0_106 = arith.constant 0 : index
    %c0_107 = arith.constant 0 : index
    %c0_108 = arith.constant 0 : index
    %289 = vector.load %arg8[%c0_106, %c0_107, %c0_108] : memref<2x8x32xf32, #tpu.memory_space<vmem>>, vector<2x8x32xf32>
    tpu.vector_store %arg8[%c0_106, %c0_107, %c0_108], %288 {strides = array<i32>} : memref<2x8x32xf32, #tpu.memory_space<vmem>>, vector<2x8x32xf32>,
    return
  }
}

</mosaic_0001>

<llo_original>
// kernel: tpu_custom_call.1
$region0: #{tpu_custom_call.1}
  #allocation0 [shape = 'u32[]', space=smem, size = 0x4, offset = 0x4, fixed_abs, tag = 'smem constant byte address 0x4 - core index']
  #allocation1 [shape = 'u32[72,128]{1,0:T(1,128)}', space=vmem, size = 0x9000, scoped, tag = 'internal scratch']
  %s0 = inlined_call_operand.vmem [shape: s32[2,1], index: 0, kind: input, shape index: {}]
  %s1 = inlined_call_operand.hbm [shape: f32[2,8,32], index: 1, kind: input, shape index: {}]
  %s2 = inlined_call_operand.hbm [shape: f32[8,32], index: 2, kind: input, shape index: {}]
  %s3 = inlined_call_operand.vmem [shape: f32[2,32,96], index: 3, kind: input, shape index: {}]
  %s4 = inlined_call_operand.vmem [shape: f32[2,32,32], index: 4, kind: input, shape index: {}]
  %s5 = inlined_call_operand.vmem [shape: f32[2,32,64], index: 5, kind: input, shape index: {}]
  %s6 = inlined_call_operand.vmem [shape: f32[2,64,32], index: 6, kind: input, shape index: {}]
  %s7 = inlined_call_operand.vmem [shape: f32[2,4,32], index: 7, kind: input, shape index: {}]
  %s8 = inlined_call_operand.hbm [shape: f32[2,8,32], index: 8, kind: output, shape index: {0}]
  %s9 = inlined_call_operand.hbm [shape: f32[2,2,8,32], index: 9, kind: output, shape index: {1}]
  %10 = xla_tuple %s8, %s9
  %s11 = sld [smem:[#allocation0]]
  $region58: #{tpu_custom_call.1} parent=0
    _
  %s13 = ssub.s32 1, %s11
  %s14 = scalar_select 0, %s13, %s11
  $region1: #{tpu_custom_call.1} parent=0
    #allocation2 [shape = 'u8[8192]{0}', space=vmem, size = 0x2000, scoped, tag = 'input window, operand 1, single buffered']
    #allocation3 [shape = 's32[1]{0}', space=sflag, size = 0x4, scoped, tag = 'scoped memory for tpu_custom_call.1']
    #allocation4 [shape = 's32[1]{0}', space=sflag, size = 0x4, scoped, tag = 'scoped memory for tpu_custom_call.1']
    #allocation5 [shape = 'u8[4096]{0}', space=vmem, size = 0x1000, scoped, tag = 'input window, operand 2, single buffered']
    #allocation6 [shape = 's32[1]{0}', space=sflag, size = 0x4, scoped, tag = 'scoped memory for tpu_custom_call.1']
    #allocation7 [shape = 'u8[8192]{0}', space=vmem, size = 0x2000, scoped, tag = 'output window, operand 0, single buffered']
    #allocation8 [shape = 'u8[16384]{0}', space=vmem, size = 0x4000, scoped, tag = 'output window, operand 1, single buffered']
    #allocation9 [shape = 's32[1]{0}', space=sflag, size = 0x4, scoped, tag = 'scoped memory for tpu_custom_call.1']
    %15 = vsyncpa [#allocation3], 0
    %16 = vsyncpa [#allocation6], 0
    %17 = vsyncpa [#allocation4], 0
    %18 = vsyncpa [#allocation9], 0
    // Predicated region
    $region2: #{tpu_custom_call.1} parent=1 // pred_check
      _
    $region3: #{tpu_custom_call.1} parent=1 // pred_check_branch
      %20 = sbr.rel (0) target = $region5
    $region4: #{tpu_custom_call.1} parent=1 // pred_region
      _
    $region5: #{tpu_custom_call.1} parent=1 // pred_fallthru
      _
    // Predicated region
    $region6: #{tpu_custom_call.1} parent=1 // pred_check
      _
    $region7: #{tpu_custom_call.1} parent=1 // pred_check_branch
      %22 = sbr.rel (0) target = $region9
    $region8: #{tpu_custom_call.1} parent=1 // pred_region
      %24 = vsyncadd [#allocation3], 0
      %s25 = sshll.u32 %s1, 4
      %s26 = int_to_ptr.hbm [resolvable:$true] %s25
      %s27 = sshll.u32 [#allocation2], 4
      %s28 = int_to_ptr.vmem [resolvable:$true] %s27
      %33 = dma.hbm_to_vmem [thread:$0]  %s26, 256, %s28, [#allocation3], 128, 128, 8
    $region9: #{tpu_custom_call.1} parent=1 // pred_fallthru
      _
    // Predicated region
    $region10: #{tpu_custom_call.1} parent=1 // pred_check
      _
    $region11: #{tpu_custom_call.1} parent=1 // pred_check_branch
      %35 = sbr.rel (0) target = $region13
    $region12: #{tpu_custom_call.1} parent=1 // pred_region
      %37 = vsyncadd [#allocation6], 0
      %s39 = sshll.u32 %s2, 4
      %s40 = int_to_ptr.hbm [resolvable:$true] %s39
      %s41 = sshll.u32 [#allocation5], 4
      %s42 = int_to_ptr.vmem [resolvable:$true] %s41
      %44 = dma.hbm_to_vmem [thread:$0]  %s40, 128, %s42, [#allocation6]
    $region13: #{tpu_custom_call.1} parent=1 // pred_fallthru
      _
    // Predicated region
    $region14: #{tpu_custom_call.1} parent=1 // pred_check
      _
    $region15: #{tpu_custom_call.1} parent=1 // pred_check_branch
      %46 = sbr.rel (0) target = $region17
    $region16: #{tpu_custom_call.1} parent=1 // pred_region
      _
    $region17: #{tpu_custom_call.1} parent=1 // pred_fallthru
      _
    // Predicated region
    $region18: #{tpu_custom_call.1} parent=1 // pred_check
      _
    $region19: #{tpu_custom_call.1} parent=1 // pred_check_branch
      %48 = sbr.rel (0) target = $region21
    $region20: #{tpu_custom_call.1} parent=1 // pred_region
      _
    $region21: #{tpu_custom_call.1} parent=1 // pred_fallthru
      _
    // Predicated region
    $region22: #{tpu_custom_call.1} parent=1 // pred_check
      _
    $region23: #{tpu_custom_call.1} parent=1 // pred_check_branch
      %50 = sbr.rel (0) target = $region25
    $region24: #{tpu_custom_call.1} parent=1 // pred_region
      _
    $region25: #{tpu_custom_call.1} parent=1 // pred_fallthru
      _
    // Predicated region
    $region26: #{tpu_custom_call.1} parent=1 // pred_check
      _
    $region27: #{tpu_custom_call.1} parent=1 // pred_check_branch
      %52 = sbr.rel (0) target = $region29
    $region28: #{tpu_custom_call.1} parent=1 // pred_region
      _
    $region29: #{tpu_custom_call.1} parent=1 // pred_fallthru
      _
    // Predicated region
    $region30: #{tpu_custom_call.1} parent=1 // pred_check
      _
    $region31: #{tpu_custom_call.1} parent=1 // pred_check_branch
      %54 = sbr.rel (0) target = $region33
    $region32: #{tpu_custom_call.1} parent=1 // pred_region
      _
    $region33: #{tpu_custom_call.1} parent=1 // pred_fallthru
      _
    // Predicated region
    $region34: #{tpu_custom_call.1} parent=1 // pred_check
      _
    $region35: #{tpu_custom_call.1} parent=1 // pred_check_branch
      %56 = sbr.rel (0) target = $region37
    $region36: #{tpu_custom_call.1} parent=1 // pred_region
      %58 = dma.done [#allocation3], 256
    $region37: #{tpu_custom_call.1} parent=1 // pred_fallthru
      _
    // Predicated region
    $region38: #{tpu_custom_call.1} parent=1 // pred_check
      _
    $region39: #{tpu_custom_call.1} parent=1 // pred_check_branch
      %60 = sbr.rel (0) target = $region41
    $region40: #{tpu_custom_call.1} parent=1 // pred_region
      %62 = dma.done [#allocation6], 128
    $region41: #{tpu_custom_call.1} parent=1 // pred_fallthru
      _
    %v63 = vld [vmem:[#allocation2] sm:$0xff]
    %v64 = vld [vmem:[#allocation2 + $0x8] sm:$0xff]
    %v65 = vld [vmem:[#allocation5] sm:$0xff]
    %v66 = vadd.f32 %v63, %v65
    %v67 = vadd.f32 %v64, %v65
    %v68 = vlaneseq
    %v69 = vand.u32 %v68, 127
    %v70 = vld [vmem:[%s0] sm:$0x3]
    %v71 = vrot.slane %v70, 1
    %v72 = vperm.slane %v70, 0
    %v73 = vperm.slane %v71, 0
    %74 = vset.pattern.permute.xlu0 0
    %75 = vperm.xlu0 %74, %v72
    %v76 = vpop.permute.xlu0 %75
    %77 = vset.pattern.permute.xlu0 0
    %78 = vperm.xlu0 %77, %v73
    %v79 = vpop.permute.xlu0 %78
    %vm80 = vcmp.ge.s32.totalorder %v69, %v76
    %vm81 = vcmp.ge.s32.totalorder %v69, %v79
    %v82 = vsel %vm80, -1e+09, 0.0
    %v83 = vsel %vm81, -1e+09, 0.0
    %v84 = vld [vmem:[%s7] sm:$0xf]
    %v85 = vld [vmem:[%s3] sm:$0xff]
    %v86 = vld [vmem:[%s3 + $0x8] sm:$0xff]
    %v87 = vld [vmem:[%s3 + $0x10] sm:$0xff]
    %v88 = vld [vmem:[%s3 + $0x18] sm:$0xff]
    %vm89 = vcmask 261120
    %v91 = vsel %vm89, %v66, 0
    %v94 = vsel %vm89, %v67, 0
    %96 = vmatpush.msra.mxu0 0.0
    %97 = vmatpush.msra.mxu0 0.0
    %98 = vmatpush.msra.mxu0 0.0
    %99 = vmatpush.msra.mxu0 0.0
    %100 = vmatpush.msra.mxu0 0.0
    %101 = vmatpush.msra.mxu0 0.0
    %102 = vmatpush.msra.mxu0 0.0
    %103 = vmatpush.msra.mxu0 0.0
    %104 = vmatpush.msra.mxu0 0.0
    %105 = vmatpush.msra.mxu0 0.0
    %106 = vmatpush.msra.mxu0 0.0
    %107 = vmatpush.msra.mxu0 0.0
    %108 = vmatpush.msra.mxu0 %v88
    %109 = vmatpush.msra.mxu0 %v87
    %110 = vmatpush.msra.mxu0 %v86
    %111 = vmatpush.msra.mxu0 %v85
    %112 = vmatmul.f32.gmra.mxu0 %v91
    %v113 = vpop.f32.mrf.mxu0
    %v114 = vadd.f32 0.0, %v113
    %115 = vmatmul.f32.gmra.mxu0 %v94
    %v116 = vpop.f32.mrf.mxu0
    %v117 = vadd.f32 0.0, %v116
    %118 = vdwg.mxu0
    %120 = vrot.lane.b32.xlu0 %v114, 120
    %v121 = vpop.permute.xlu0 %120
    %vm122 = vcmask 64512
    %v123 = vsel %vm122, %v114, 0
    %v125 = vsel %vm122, %v121, 0
    %127 = vmatpush.xpose.msra.mxu0 0.0
    %128 = vmatpush.xpose.msra.mxu0 0.0
    %129 = vmatpush.xpose.msra.mxu0 0.0
    %130 = vmatpush.xpose.msra.mxu0 0.0
    %131 = vmatpush.xpose.msra.mxu0 0.0
    %132 = vmatpush.xpose.msra.mxu0 0.0
    %133 = vmatpush.xpose.msra.mxu0 0.0
    %134 = vmatpush.xpose.msra.mxu0 0.0
    %135 = vmatpush.xpose.msra.mxu0 0.0
    %136 = vmatpush.xpose.msra.mxu0 0.0
    %137 = vmatpush.xpose.msra.mxu0 0.0
    %138 = vmatpush.xpose.msra.mxu0 0.0
    %139 = vmatpush.xpose.msra.mxu0 0.0
    %140 = vmatpush.xpose.msra.mxu0 0.0
    %141 = vmatpush.xpose.msra.mxu0 0.0
    %142 = vmatpush.xpose.msra.mxu0 %v125
    %143 = vmatmul.f32.gmra.mxu0 %v123
    %v144 = vpop.f32.mrf.mxu0
    %v145 = vadd.f32 %v82, %v144
    %146 = vdwg.mxu0
    %148 = vrot.lane.b32.xlu0 %v117, 120
    %v149 = vpop.permute.xlu0 %148
    %v150 = vsel %vm122, %v117, 0
    %v152 = vsel %vm122, %v149, 0
    %154 = vmatpush.xpose.msra.mxu0 0.0
    %155 = vmatpush.xpose.msra.mxu0 0.0
    %156 = vmatpush.xpose.msra.mxu0 0.0
    %157 = vmatpush.xpose.msra.mxu0 0.0
    %158 = vmatpush.xpose.msra.mxu0 0.0
    %159 = vmatpush.xpose.msra.mxu0 0.0
    %160 = vmatpush.xpose.msra.mxu0 0.0
    %161 = vmatpush.xpose.msra.mxu0 0.0
    %162 = vmatpush.xpose.msra.mxu0 0.0
    %163 = vmatpush.xpose.msra.mxu0 0.0
    %164 = vmatpush.xpose.msra.mxu0 0.0
    %165 = vmatpush.xpose.msra.mxu0 0.0
    %166 = vmatpush.xpose.msra.mxu0 0.0
    %167 = vmatpush.xpose.msra.mxu0 0.0
    %168 = vmatpush.xpose.msra.mxu0 0.0
    %169 = vmatpush.xpose.msra.mxu0 %v152
    %170 = vmatmul.f32.gmra.mxu0 %v150
    %v171 = vpop.f32.mrf.mxu0
    %v172 = vadd.f32 %v83, %v171
    %173 = vdwg.mxu0
    %v174 = vsel %vm122, %v145, -inf
    %175 = vmax.xlane.f32.xlu0 %v174
    %v176 = vpop.xlane.xlu0 %175
    %v177 = vsel %vm122, %v172, -inf
    %178 = vmax.xlane.f32.xlu0 %v177
    %v179 = vpop.xlane.xlu0 %178
    %v180 = vsub.f32 %v145, %v176
    %v181 = vsub.f32 %v172, %v179
    %v182 = vmul.f32 %v180, 1.442695
    %v183 = vpow.pop %v182
    %v184 = vmul.f32 %v181, 1.442695
    %v185 = vpow.pop %v184
    %v186 = vsel %vm122, %v183, 0.0
    %187 = vadd.xlane.f32.xlu0 %v186
    %v188 = vpop.xlane.xlu0 %187
    %v189 = vsel %vm122, %v185, 0.0
    %190 = vadd.xlane.f32.xlu0 %v189
    %v191 = vpop.xlane.xlu0 %190
    %v192 = vrcp.pop %v188
    %v193 = vmul.f32 %v188, %v192
    %v194 = vsub.f32 1.0, %v193
    %v195 = vmul.f32 %v192, %v194
    %v196 = vadd.f32 %v192, %v195
    %vm197 = vweird.f32 %v188
    %vm198 = vweird.f32 %v192
    %vm199 = vmor %vm197, %vm198
    %v200 = vsel %vm199, %v192, %v196
    %v201 = vand.u32 2147483647, %v188
    %vm202 = vcmp.eq.f32.partialorder %v201, 8.507059e+37
    %v203 = vand.u32 %v188, 2147483648
    %v204 = vor.u32 1.1754944e-38, %v203
    %v205 = vsel %vm202, %v204, %v200
    %v206 = vrcp.pop %v191
    %v207 = vmul.f32 %v191, %v206
    %v208 = vsub.f32 1.0, %v207
    %v209 = vmul.f32 %v206, %v208
    %v210 = vadd.f32 %v206, %v209
    %vm211 = vweird.f32 %v191
    %vm212 = vweird.f32 %v206
    %vm213 = vmor %vm211, %vm212
    %v214 = vsel %vm213, %v206, %v210
    %v215 = vand.u32 2147483647, %v191
    %vm216 = vcmp.eq.f32.partialorder %v215, 8.507059e+37
    %v217 = vand.u32 %v191, 2147483648
    %v218 = vor.u32 1.1754944e-38, %v217
    %v219 = vsel %vm216, %v218, %v214
    %v220 = vmul.f32 %v183, %v205
    %v221 = vmul.f32 %v185, %v219
    %222 = vrot.lane.b32.xlu0 %v114, 112
    %v223 = vpop.permute.xlu0 %222
    %v226 = vsel %vm122, %v220, 0
    %228 = vmatpush.msra.mxu0 0.0
    %229 = vmatpush.msra.mxu0 0.0
    %230 = vmatpush.msra.mxu0 0.0
    %231 = vmatpush.msra.mxu0 0.0
    %232 = vmatpush.msra.mxu0 0.0
    %233 = vmatpush.msra.mxu0 0.0
    %234 = vmatpush.msra.mxu0 0.0
    %235 = vmatpush.msra.mxu0 0.0
    %236 = vmatpush.msra.mxu0 0.0
    %237 = vmatpush.msra.mxu0 0.0
    %238 = vmatpush.msra.mxu0 0.0
    %239 = vmatpush.msra.mxu0 0.0
    %240 = vmatpush.msra.mxu0 0.0
    %241 = vmatpush.msra.mxu0 0.0
    %242 = vmatpush.msra.mxu0 0.0
    %243 = vmatpush.msra.mxu0 %v223
    %244 = vmatmul.f32.gmra.mxu0 %v226
    %v245 = vpop.f32.mrf.mxu0
    %v246 = vadd.f32 0.0, %v245
    %247 = vdwg.mxu0
    %248 = vrot.lane.b32.xlu0 %v117, 112
    %v249 = vpop.permute.xlu0 %248
    %v252 = vsel %vm122, %v221, 0
    %254 = vmatpush.msra.mxu0 0.0
    %255 = vmatpush.msra.mxu0 0.0
    %256 = vmatpush.msra.mxu0 0.0
    %257 = vmatpush.msra.mxu0 0.0
    %258 = vmatpush.msra.mxu0 0.0
    %259 = vmatpush.msra.mxu0 0.0
    %260 = vmatpush.msra.mxu0 0.0
    %261 = vmatpush.msra.mxu0 0.0
    %262 = vmatpush.msra.mxu0 0.0
    %263 = vmatpush.msra.mxu0 0.0
    %264 = vmatpush.msra.mxu0 0.0
    %265 = vmatpush.msra.mxu0 0.0
    %266 = vmatpush.msra.mxu0 0.0
    %267 = vmatpush.msra.mxu0 0.0
    %268 = vmatpush.msra.mxu0 0.0
    %269 = vmatpush.msra.mxu0 %v249
    %270 = vmatmul.f32.gmra.mxu0 %v252
    %v271 = vpop.f32.mrf.mxu0
    %v272 = vadd.f32 0.0, %v271
    %273 = vdwg.mxu0
    %274 = vrot.lane.b32.xlu0 %v114, 104
    %v275 = vpop.permute.xlu0 %274
    %276 = vrot.lane.b32.xlu0 %v114, 96
    %v277 = vpop.permute.xlu0 %276
    %v278 = vsel %vm122, %v275, 0
    %v280 = vsel %vm122, %v277, 0
    %282 = vmatpush.xpose.msra.mxu0 0.0
    %283 = vmatpush.xpose.msra.mxu0 0.0
    %284 = vmatpush.xpose.msra.mxu0 0.0
    %285 = vmatpush.xpose.msra.mxu0 0.0
    %286 = vmatpush.xpose.msra.mxu0 0.0
    %287 = vmatpush.xpose.msra.mxu0 0.0
    %288 = vmatpush.xpose.msra.mxu0 0.0
    %289 = vmatpush.xpose.msra.mxu0 0.0
    %290 = vmatpush.xpose.msra.mxu0 0.0
    %291 = vmatpush.xpose.msra.mxu0 0.0
    %292 = vmatpush.xpose.msra.mxu0 0.0
    %293 = vmatpush.xpose.msra.mxu0 0.0
    %294 = vmatpush.xpose.msra.mxu0 0.0
    %295 = vmatpush.xpose.msra.mxu0 0.0
    %296 = vmatpush.xpose.msra.mxu0 0.0
    %297 = vmatpush.xpose.msra.mxu0 %v280
    %298 = vmatmul.f32.gmra.mxu0 %v278
    %v299 = vpop.f32.mrf.mxu0
    %v300 = vadd.f32 %v82, %v299
    %301 = vdwg.mxu0
    %302 = vrot.lane.b32.xlu0 %v117, 104
    %v303 = vpop.permute.xlu0 %302
    %304 = vrot.lane.b32.xlu0 %v117, 96
    %v305 = vpop.permute.xlu0 %304
    %v306 = vsel %vm122, %v303, 0
    %v308 = vsel %vm122, %v305, 0
    %310 = vmatpush.xpose.msra.mxu0 0.0
    %311 = vmatpush.xpose.msra.mxu0 0.0
    %312 = vmatpush.xpose.msra.mxu0 0.0
    %313 = vmatpush.xpose.msra.mxu0 0.0
    %314 = vmatpush.xpose.msra.mxu0 0.0
    %315 = vmatpush.xpose.msra.mxu0 0.0
    %316 = vmatpush.xpose.msra.mxu0 0.0
    %317 = vmatpush.xpose.msra.mxu0 0.0
    %318 = vmatpush.xpose.msra.mxu0 0.0
    %319 = vmatpush.xpose.msra.mxu0 0.0
    %320 = vmatpush.xpose.msra.mxu0 0.0
    %321 = vmatpush.xpose.msra.mxu0 0.0
    %322 = vmatpush.xpose.msra.mxu0 0.0
    %323 = vmatpush.xpose.msra.mxu0 0.0
    %324 = vmatpush.xpose.msra.mxu0 0.0
    %325 = vmatpush.xpose.msra.mxu0 %v308
    %326 = vmatmul.f32.gmra.mxu0 %v306
    %v327 = vpop.f32.mrf.mxu0
    %v328 = vadd.f32 %v83, %v327
    %329 = vdwg.mxu0
    %v330 = vsel %vm122, %v300, -inf
    %331 = vmax.xlane.f32.xlu0 %v330
    %v332 = vpop.xlane.xlu0 %331
    %v333 = vsel %vm122, %v328, -inf
    %334 = vmax.xlane.f32.xlu0 %v333
    %v335 = vpop.xlane.xlu0 %334
    %v336 = vsub.f32 %v300, %v332
    %v337 = vsub.f32 %v328, %v335
    %v338 = vmul.f32 %v336, 1.442695
    %v339 = vpow.pop %v338
    %v340 = vmul.f32 %v337, 1.442695
    %v341 = vpow.pop %v340
    %v342 = vsel %vm122, %v339, 0.0
    %343 = vadd.xlane.f32.xlu0 %v342
    %v344 = vpop.xlane.xlu0 %343
    %v345 = vsel %vm122, %v341, 0.0
    %346 = vadd.xlane.f32.xlu0 %v345
    %v347 = vpop.xlane.xlu0 %346
    %v348 = vrcp.pop %v344
    %v349 = vmul.f32 %v344, %v348
    %v350 = vsub.f32 1.0, %v349
    %v351 = vmul.f32 %v348, %v350
    %v352 = vadd.f32 %v348, %v351
    %vm353 = vweird.f32 %v344
    %vm354 = vweird.f32 %v348
    %vm355 = vmor %vm353, %vm354
    %v356 = vsel %vm355, %v348, %v352
    %v357 = vand.u32 2147483647, %v344
    %vm358 = vcmp.eq.f32.partialorder %v357, 8.507059e+37
    %v359 = vand.u32 %v344, 2147483648
    %v360 = vor.u32 1.1754944e-38, %v359
    %v361 = vsel %vm358, %v360, %v356
    %v362 = vrcp.pop %v347
    %v363 = vmul.f32 %v347, %v362
    %v364 = vsub.f32 1.0, %v363
    %v365 = vmul.f32 %v362, %v364
    %v366 = vadd.f32 %v362, %v365
    %vm367 = vweird.f32 %v347
    %vm368 = vweird.f32 %v362
    %vm369 = vmor %vm367, %vm368
    %v370 = vsel %vm369, %v362, %v366
    %v371 = vand.u32 2147483647, %v347
    %vm372 = vcmp.eq.f32.partialorder %v371, 8.507059e+37
    %v373 = vand.u32 %v347, 2147483648
    %v374 = vor.u32 1.1754944e-38, %v373
    %v375 = vsel %vm372, %v374, %v370
    %v376 = vmul.f32 %v339, %v361
    %v377 = vmul.f32 %v341, %v375
    %378 = vrot.lane.b32.xlu0 %v114, 88
    %v379 = vpop.permute.xlu0 %378
    %v382 = vsel %vm122, %v376, 0
    %384 = vmatpush.msra.mxu0 0.0
    %385 = vmatpush.msra.mxu0 0.0
    %386 = vmatpush.msra.mxu0 0.0
    %387 = vmatpush.msra.mxu0 0.0
    %388 = vmatpush.msra.mxu0 0.0
    %389 = vmatpush.msra.mxu0 0.0
    %390 = vmatpush.msra.mxu0 0.0
    %391 = vmatpush.msra.mxu0 0.0
    %392 = vmatpush.msra.mxu0 0.0
    %393 = vmatpush.msra.mxu0 0.0
    %394 = vmatpush.msra.mxu0 0.0
    %395 = vmatpush.msra.mxu0 0.0
    %396 = vmatpush.msra.mxu0 0.0
    %397 = vmatpush.msra.mxu0 0.0
    %398 = vmatpush.msra.mxu0 0.0
    %399 = vmatpush.msra.mxu0 %v379
    %400 = vmatmul.f32.gmra.mxu0 %v382
    %v401 = vpop.f32.mrf.mxu0
    %v402 = vadd.f32 0.0, %v401
    %403 = vdwg.mxu0
    %404 = vrot.lane.b32.xlu0 %v117, 88
    %v405 = vpop.permute.xlu0 %404
    %v408 = vsel %vm122, %v377, 0
    %410 = vmatpush.msra.mxu0 0.0
    %411 = vmatpush.msra.mxu0 0.0
    %412 = vmatpush.msra.mxu0 0.0
    %413 = vmatpush.msra.mxu0 0.0
    %414 = vmatpush.msra.mxu0 0.0
    %415 = vmatpush.msra.mxu0 0.0
    %416 = vmatpush.msra.mxu0 0.0
    %417 = vmatpush.msra.mxu0 0.0
    %418 = vmatpush.msra.mxu0 0.0
    %419 = vmatpush.msra.mxu0 0.0
    %420 = vmatpush.msra.mxu0 0.0
    %421 = vmatpush.msra.mxu0 0.0
    %422 = vmatpush.msra.mxu0 0.0
    %423 = vmatpush.msra.mxu0 0.0
    %424 = vmatpush.msra.mxu0 0.0
    %425 = vmatpush.msra.mxu0 %v405
    %426 = vmatmul.f32.gmra.mxu0 %v408
    %v427 = vpop.f32.mrf.mxu0
    %v428 = vadd.f32 0.0, %v427
    %429 = vdwg.mxu0
    %430 = vrot.lane.b32.xlu0 %v114, 80
    %v431 = vpop.permute.xlu0 %430
    %432 = vrot.lane.b32.xlu0 %v114, 72
    %v433 = vpop.permute.xlu0 %432
    %v434 = vsel %vm122, %v431, 0
    %v436 = vsel %vm122, %v433, 0
    %438 = vmatpush.xpose.msra.mxu0 0.0
    %439 = vmatpush.xpose.msra.mxu0 0.0
    %440 = vmatpush.xpose.msra.mxu0 0.0
    %441 = vmatpush.xpose.msra.mxu0 0.0
    %442 = vmatpush.xpose.msra.mxu0 0.0
    %443 = vmatpush.xpose.msra.mxu0 0.0
    %444 = vmatpush.xpose.msra.mxu0 0.0
    %445 = vmatpush.xpose.msra.mxu0 0.0
    %446 = vmatpush.xpose.msra.mxu0 0.0
    %447 = vmatpush.xpose.msra.mxu0 0.0
    %448 = vmatpush.xpose.msra.mxu0 0.0
    %449 = vmatpush.xpose.msra.mxu0 0.0
    %450 = vmatpush.xpose.msra.mxu0 0.0
    %451 = vmatpush.xpose.msra.mxu0 0.0
    %452 = vmatpush.xpose.msra.mxu0 0.0
    %453 = vmatpush.xpose.msra.mxu0 %v436
    %454 = vmatmul.f32.gmra.mxu0 %v434
    %v455 = vpop.f32.mrf.mxu0
    %v456 = vadd.f32 %v82, %v455
    %457 = vdwg.mxu0
    %458 = vrot.lane.b32.xlu0 %v117, 80
    %v459 = vpop.permute.xlu0 %458
    %460 = vrot.lane.b32.xlu0 %v117, 72
    %v461 = vpop.permute.xlu0 %460
    %v462 = vsel %vm122, %v459, 0
    %v464 = vsel %vm122, %v461, 0
    %466 = vmatpush.xpose.msra.mxu0 0.0
    %467 = vmatpush.xpose.msra.mxu0 0.0
    %468 = vmatpush.xpose.msra.mxu0 0.0
    %469 = vmatpush.xpose.msra.mxu0 0.0
    %470 = vmatpush.xpose.msra.mxu0 0.0
    %471 = vmatpush.xpose.msra.mxu0 0.0
    %472 = vmatpush.xpose.msra.mxu0 0.0
    %473 = vmatpush.xpose.msra.mxu0 0.0
    %474 = vmatpush.xpose.msra.mxu0 0.0
    %475 = vmatpush.xpose.msra.mxu0 0.0
    %476 = vmatpush.xpose.msra.mxu0 0.0
    %477 = vmatpush.xpose.msra.mxu0 0.0
    %478 = vmatpush.xpose.msra.mxu0 0.0
    %479 = vmatpush.xpose.msra.mxu0 0.0
    %480 = vmatpush.xpose.msra.mxu0 0.0
    %481 = vmatpush.xpose.msra.mxu0 %v464
    %482 = vmatmul.f32.gmra.mxu0 %v462
    %v483 = vpop.f32.mrf.mxu0
    %v484 = vadd.f32 %v83, %v483
    %485 = vdwg.mxu0
    %v486 = vsel %vm122, %v456, -inf
    %487 = vmax.xlane.f32.xlu0 %v486
    %v488 = vpop.xlane.xlu0 %487
    %v489 = vsel %vm122, %v484, -inf
    %490 = vmax.xlane.f32.xlu0 %v489
    %v491 = vpop.xlane.xlu0 %490
    %v492 = vsub.f32 %v456, %v488
    %v493 = vsub.f32 %v484, %v491
    %v494 = vmul.f32 %v492, 1.442695
    %v495 = vpow.pop %v494
    %v496 = vmul.f32 %v493, 1.442695
    %v497 = vpow.pop %v496
    %v498 = vsel %vm122, %v495, 0.0
    %499 = vadd.xlane.f32.xlu0 %v498
    %v500 = vpop.xlane.xlu0 %499
    %v501 = vsel %vm122, %v497, 0.0
    %502 = vadd.xlane.f32.xlu0 %v501
    %v503 = vpop.xlane.xlu0 %502
    %v504 = vrcp.pop %v500
    %v505 = vmul.f32 %v500, %v504
    %v506 = vsub.f32 1.0, %v505
    %v507 = vmul.f32 %v504, %v506
    %v508 = vadd.f32 %v504, %v507
    %vm509 = vweird.f32 %v500
    %vm510 = vweird.f32 %v504
    %vm511 = vmor %vm509, %vm510
    %v512 = vsel %vm511, %v504, %v508
    %v513 = vand.u32 2147483647, %v500
    %vm514 = vcmp.eq.f32.partialorder %v513, 8.507059e+37
    %v515 = vand.u32 %v500, 2147483648
    %v516 = vor.u32 1.1754944e-38, %v515
    %v517 = vsel %vm514, %v516, %v512
    %v518 = vrcp.pop %v503
    %v519 = vmul.f32 %v503, %v518
    %v520 = vsub.f32 1.0, %v519
    %v521 = vmul.f32 %v518, %v520
    %v522 = vadd.f32 %v518, %v521
    %vm523 = vweird.f32 %v503
    %vm524 = vweird.f32 %v518
    %vm525 = vmor %vm523, %vm524
    %v526 = vsel %vm525, %v518, %v522
    %v527 = vand.u32 2147483647, %v503
    %vm528 = vcmp.eq.f32.partialorder %v527, 8.507059e+37
    %v529 = vand.u32 %v503, 2147483648
    %v530 = vor.u32 1.1754944e-38, %v529
    %v531 = vsel %vm528, %v530, %v526
    %v532 = vmul.f32 %v495, %v517
    %v533 = vmul.f32 %v497, %v531
    %534 = vrot.lane.b32.xlu0 %v114, 64
    %v535 = vpop.permute.xlu0 %534
    %v538 = vsel %vm122, %v532, 0
    %540 = vmatpush.msra.mxu0 0.0
    %541 = vmatpush.msra.mxu0 0.0
    %542 = vmatpush.msra.mxu0 0.0
    %543 = vmatpush.msra.mxu0 0.0
    %544 = vmatpush.msra.mxu0 0.0
    %545 = vmatpush.msra.mxu0 0.0
    %546 = vmatpush.msra.mxu0 0.0
    %547 = vmatpush.msra.mxu0 0.0
    %548 = vmatpush.msra.mxu0 0.0
    %549 = vmatpush.msra.mxu0 0.0
    %550 = vmatpush.msra.mxu0 0.0
    %551 = vmatpush.msra.mxu0 0.0
    %552 = vmatpush.msra.mxu0 0.0
    %553 = vmatpush.msra.mxu0 0.0
    %554 = vmatpush.msra.mxu0 0.0
    %555 = vmatpush.msra.mxu0 %v535
    %556 = vmatmul.f32.gmra.mxu0 %v538
    %v557 = vpop.f32.mrf.mxu0
    %v558 = vadd.f32 0.0, %v557
    %559 = vdwg.mxu0
    %560 = vrot.lane.b32.xlu0 %v117, 64
    %v561 = vpop.permute.xlu0 %560
    %v564 = vsel %vm122, %v533, 0
    %566 = vmatpush.msra.mxu0 0.0
    %567 = vmatpush.msra.mxu0 0.0
    %568 = vmatpush.msra.mxu0 0.0
    %569 = vmatpush.msra.mxu0 0.0
    %570 = vmatpush.msra.mxu0 0.0
    %571 = vmatpush.msra.mxu0 0.0
    %572 = vmatpush.msra.mxu0 0.0
    %573 = vmatpush.msra.mxu0 0.0
    %574 = vmatpush.msra.mxu0 0.0
    %575 = vmatpush.msra.mxu0 0.0
    %576 = vmatpush.msra.mxu0 0.0
    %577 = vmatpush.msra.mxu0 0.0
    %578 = vmatpush.msra.mxu0 0.0
    %579 = vmatpush.msra.mxu0 0.0
    %580 = vmatpush.msra.mxu0 0.0
    %581 = vmatpush.msra.mxu0 %v561
    %582 = vmatmul.f32.gmra.mxu0 %v564
    %v583 = vpop.f32.mrf.mxu0
    %v584 = vadd.f32 0.0, %v583
    %585 = vdwg.mxu0
    %586 = vrot.lane.b32.xlu0 %v114, 56
    %v587 = vpop.permute.xlu0 %586
    %588 = vrot.lane.b32.xlu0 %v114, 48
    %v589 = vpop.permute.xlu0 %588
    %v590 = vsel %vm122, %v587, 0
    %v592 = vsel %vm122, %v589, 0
    %594 = vmatpush.xpose.msra.mxu0 0.0
    %595 = vmatpush.xpose.msra.mxu0 0.0
    %596 = vmatpush.xpose.msra.mxu0 0.0
    %597 = vmatpush.xpose.msra.mxu0 0.0
    %598 = vmatpush.xpose.msra.mxu0 0.0
    %599 = vmatpush.xpose.msra.mxu0 0.0
    %600 = vmatpush.xpose.msra.mxu0 0.0
    %601 = vmatpush.xpose.msra.mxu0 0.0
    %602 = vmatpush.xpose.msra.mxu0 0.0
    %603 = vmatpush.xpose.msra.mxu0 0.0
    %604 = vmatpush.xpose.msra.mxu0 0.0
    %605 = vmatpush.xpose.msra.mxu0 0.0
    %606 = vmatpush.xpose.msra.mxu0 0.0
    %607 = vmatpush.xpose.msra.mxu0 0.0
    %608 = vmatpush.xpose.msra.mxu0 0.0
    %609 = vmatpush.xpose.msra.mxu0 %v592
    %610 = vmatmul.f32.gmra.mxu0 %v590
    %v611 = vpop.f32.mrf.mxu0
    %v612 = vadd.f32 %v82, %v611
    %613 = vdwg.mxu0
    %614 = vrot.lane.b32.xlu0 %v117, 56
    %v615 = vpop.permute.xlu0 %614
    %616 = vrot.lane.b32.xlu0 %v117, 48
    %v617 = vpop.permute.xlu0 %616
    %v618 = vsel %vm122, %v615, 0
    %v620 = vsel %vm122, %v617, 0
    %622 = vmatpush.xpose.msra.mxu0 0.0
    %623 = vmatpush.xpose.msra.mxu0 0.0
    %624 = vmatpush.xpose.msra.mxu0 0.0
    %625 = vmatpush.xpose.msra.mxu0 0.0
    %626 = vmatpush.xpose.msra.mxu0 0.0
    %627 = vmatpush.xpose.msra.mxu0 0.0
    %628 = vmatpush.xpose.msra.mxu0 0.0
    %629 = vmatpush.xpose.msra.mxu0 0.0
    %630 = vmatpush.xpose.msra.mxu0 0.0
    %631 = vmatpush.xpose.msra.mxu0 0.0
    %632 = vmatpush.xpose.msra.mxu0 0.0
    %633 = vmatpush.xpose.msra.mxu0 0.0
    %634 = vmatpush.xpose.msra.mxu0 0.0
    %635 = vmatpush.xpose.msra.mxu0 0.0
    %636 = vmatpush.xpose.msra.mxu0 0.0
    %637 = vmatpush.xpose.msra.mxu0 %v620
    %638 = vmatmul.f32.gmra.mxu0 %v618
    %v639 = vpop.f32.mrf.mxu0
    %v640 = vadd.f32 %v83, %v639
    %641 = vdwg.mxu0
    %v642 = vsel %vm122, %v612, -inf
    %643 = vmax.xlane.f32.xlu0 %v642
    %v644 = vpop.xlane.xlu0 %643
    %v645 = vsel %vm122, %v640, -inf
    %646 = vmax.xlane.f32.xlu0 %v645
    %v647 = vpop.xlane.xlu0 %646
    %v648 = vsub.f32 %v612, %v644
    %v649 = vsub.f32 %v640, %v647
    %v650 = vmul.f32 %v648, 1.442695
    %v651 = vpow.pop %v650
    %v652 = vmul.f32 %v649, 1.442695
    %v653 = vpow.pop %v652
    %v654 = vsel %vm122, %v651, 0.0
    %655 = vadd.xlane.f32.xlu0 %v654
    %v656 = vpop.xlane.xlu0 %655
    %v657 = vsel %vm122, %v653, 0.0
    %658 = vadd.xlane.f32.xlu0 %v657
    %v659 = vpop.xlane.xlu0 %658
    %v660 = vrcp.pop %v656
    %v661 = vmul.f32 %v656, %v660
    %v662 = vsub.f32 1.0, %v661
    %v663 = vmul.f32 %v660, %v662
    %v664 = vadd.f32 %v660, %v663
    %vm665 = vweird.f32 %v656
    %vm666 = vweird.f32 %v660
    %vm667 = vmor %vm665, %vm666
    %v668 = vsel %vm667, %v660, %v664
    %v669 = vand.u32 2147483647, %v656
    %vm670 = vcmp.eq.f32.partialorder %v669, 8.507059e+37
    %v671 = vand.u32 %v656, 2147483648
    %v672 = vor.u32 1.1754944e-38, %v671
    %v673 = vsel %vm670, %v672, %v668
    %v674 = vrcp.pop %v659
    %v675 = vmul.f32 %v659, %v674
    %v676 = vsub.f32 1.0, %v675
    %v677 = vmul.f32 %v674, %v676
    %v678 = vadd.f32 %v674, %v677
    %vm679 = vweird.f32 %v659
    %vm680 = vweird.f32 %v674
    %vm681 = vmor %vm679, %vm680
    %v682 = vsel %vm681, %v674, %v678
    %v683 = vand.u32 2147483647, %v659
    %vm684 = vcmp.eq.f32.partialorder %v683, 8.507059e+37
    %v685 = vand.u32 %v659, 2147483648
    %v686 = vor.u32 1.1754944e-38, %v685
    %v687 = vsel %vm684, %v686, %v682
    %v688 = vmul.f32 %v651, %v673
    %v689 = vmul.f32 %v653, %v687
    %690 = vrot.lane.b32.xlu0 %v114, 40
    %v691 = vpop.permute.xlu0 %690
    %v694 = vsel %vm122, %v688, 0
    %696 = vmatpush.msra.mxu0 0.0
    %697 = vmatpush.msra.mxu0 0.0
    %698 = vmatpush.msra.mxu0 0.0
    %699 = vmatpush.msra.mxu0 0.0
    %700 = vmatpush.msra.mxu0 0.0
    %701 = vmatpush.msra.mxu0 0.0
    %702 = vmatpush.msra.mxu0 0.0
    %703 = vmatpush.msra.mxu0 0.0
    %704 = vmatpush.msra.mxu0 0.0
    %705 = vmatpush.msra.mxu0 0.0
    %706 = vmatpush.msra.mxu0 0.0
    %707 = vmatpush.msra.mxu0 0.0
    %708 = vmatpush.msra.mxu0 0.0
    %709 = vmatpush.msra.mxu0 0.0
    %710 = vmatpush.msra.mxu0 0.0
    %711 = vmatpush.msra.mxu0 %v691
    %712 = vmatmul.f32.gmra.mxu0 %v694
    %v713 = vpop.f32.mrf.mxu0
    %v714 = vadd.f32 0.0, %v713
    %715 = vdwg.mxu0
    %716 = vrot.lane.b32.xlu0 %v117, 40
    %v717 = vpop.permute.xlu0 %716
    %v720 = vsel %vm122, %v689, 0
    %722 = vmatpush.msra.mxu0 0.0
    %723 = vmatpush.msra.mxu0 0.0
    %724 = vmatpush.msra.mxu0 0.0
    %725 = vmatpush.msra.mxu0 0.0
    %726 = vmatpush.msra.mxu0 0.0
    %727 = vmatpush.msra.mxu0 0.0
    %728 = vmatpush.msra.mxu0 0.0
    %729 = vmatpush.msra.mxu0 0.0
    %730 = vmatpush.msra.mxu0 0.0
    %731 = vmatpush.msra.mxu0 0.0
    %732 = vmatpush.msra.mxu0 0.0
    %733 = vmatpush.msra.mxu0 0.0
    %734 = vmatpush.msra.mxu0 0.0
    %735 = vmatpush.msra.mxu0 0.0
    %736 = vmatpush.msra.mxu0 0.0
    %737 = vmatpush.msra.mxu0 %v717
    %738 = vmatmul.f32.gmra.mxu0 %v720
    %v739 = vpop.f32.mrf.mxu0
    %v740 = vadd.f32 0.0, %v739
    %741 = vdwg.mxu0
    %742 = vrot.lane.b32.xlu0 %v376, 8
    %v743 = vpop.permute.xlu0 %742
    %744 = vrot.lane.b32.xlu0 %v377, 8
    %v745 = vpop.permute.xlu0 %744
    %748 = vrot.lane.b32.xlu0 %v532, 16
    %v749 = vpop.permute.xlu0 %748
    %750 = vrot.lane.b32.xlu0 %v533, 16
    %v751 = vpop.permute.xlu0 %750
    %754 = vrot.lane.b32.xlu0 %v688, 24
    %v755 = vpop.permute.xlu0 %754
    %756 = vrot.lane.b32.xlu0 %v689, 24
    %v757 = vpop.permute.xlu0 %756
    %v760 = vsel %vm122, %v220, %v743
    %v761 = vsel %vm122, %v221, %v745
    %vm762 = vcmask 130048
    %v763 = vsel %vm762, %v760, %v749
    %v764 = vsel %vm762, %v761, %v751
    %vm765 = vcmask 195584
    %v766 = vsel %vm765, %v763, %v755
    %v767 = vsel %vm765, %v764, %v757
    %768 = vst.msk [vmem:[#allocation8] sm:$0xff] %vm89, %v766
    %769 = vst.msk [vmem:[#allocation8 + $0x8] sm:$0xff] %vm89, %v767
    %772 = vrot.lane.b32.xlu0 %v402, 8
    %v773 = vpop.permute.xlu0 %772
    %774 = vrot.lane.b32.xlu0 %v428, 8
    %v775 = vpop.permute.xlu0 %774
    %780 = vrot.lane.b32.xlu0 %v558, 16
    %v781 = vpop.permute.xlu0 %780
    %782 = vrot.lane.b32.xlu0 %v584, 16
    %v783 = vpop.permute.xlu0 %782
    %788 = vrot.lane.b32.xlu0 %v714, 24
    %v789 = vpop.permute.xlu0 %788
    %790 = vrot.lane.b32.xlu0 %v740, 24
    %v791 = vpop.permute.xlu0 %790
    %v794 = vsel %vm122, %v246, %v773
    %v795 = vsel %vm122, %v272, %v775
    %v796 = vsel %vm762, %v794, %v781
    %v797 = vsel %vm762, %v795, %v783
    %v798 = vsel %vm765, %v796, %v789
    %v799 = vsel %vm765, %v797, %v791
    %v800 = vld [vmem:[%s4] sm:$0xff]
    %v801 = vld [vmem:[%s4 + $0x8] sm:$0xff]
    %v802 = vld [vmem:[%s4 + $0x10] sm:$0xff]
    %v803 = vld [vmem:[%s4 + $0x18] sm:$0xff]
    %v805 = vsel %vm89, %v798, 0
    %v808 = vsel %vm89, %v799, 0
    %810 = vmatpush.msra.mxu0 0.0
    %811 = vmatpush.msra.mxu0 0.0
    %812 = vmatpush.msra.mxu0 0.0
    %813 = vmatpush.msra.mxu0 0.0
    %814 = vmatpush.msra.mxu0 0.0
    %815 = vmatpush.msra.mxu0 0.0
    %816 = vmatpush.msra.mxu0 0.0
    %817 = vmatpush.msra.mxu0 0.0
    %818 = vmatpush.msra.mxu0 0.0
    %819 = vmatpush.msra.mxu0 0.0
    %820 = vmatpush.msra.mxu0 0.0
    %821 = vmatpush.msra.mxu0 0.0
    %822 = vmatpush.msra.mxu0 %v803
    %823 = vmatpush.msra.mxu0 %v802
    %824 = vmatpush.msra.mxu0 %v801
    %825 = vmatpush.msra.mxu0 %v800
    %826 = vmatmul.f32.gmra.mxu0 %v805
    %v827 = vpop.f32.mrf.mxu0
    %v828 = vadd.f32 %v66, %v827
    %829 = vmatmul.f32.gmra.mxu0 %v808
    %v830 = vpop.f32.mrf.mxu0
    %v831 = vadd.f32 %v67, %v830
    %832 = vdwg.mxu0
    %v833 = vsel %vm89, %v828, 0.0
    %834 = vadd.xlane.f32.xlu0 %v833
    %v835 = vpop.xlane.xlu0 %834
    %v836 = vsel %vm89, %v831, 0.0
    %837 = vadd.xlane.f32.xlu0 %v836
    %v838 = vpop.xlane.xlu0 %837
    %v839 = vrcp.pop 32.0
    %v840 = vmul.f32 32.0, %v839
    %v841 = vsub.f32 1.0, %v840
    %v842 = vmul.f32 %v839, %v841
    %v843 = vadd.f32 %v839, %v842
    %vm844 = vweird.f32 %v839
    %v845 = vsel %vm844, %v839, %v843
    %v846 = vmul.f32 %v835, %v845
    %v847 = vmul.f32 %v838, %v845
    %v848 = vmul.f32 %v828, %v828
    %v849 = vmul.f32 %v831, %v831
    %v850 = vsel %vm89, %v848, 0.0
    %851 = vadd.xlane.f32.xlu0 %v850
    %v852 = vpop.xlane.xlu0 %851
    %v853 = vsel %vm89, %v849, 0.0
    %854 = vadd.xlane.f32.xlu0 %v853
    %v855 = vpop.xlane.xlu0 %854
    %v856 = vmul.f32 %v852, %v845
    %v857 = vmul.f32 %v855, %v845
    %v858 = vmul.f32 %v846, %v846
    %v859 = vmul.f32 %v847, %v847
    %v860 = vsub.f32 %v856, %v858
    %v861 = vsub.f32 %v857, %v859
    %v862 = vsub.f32 %v828, %v846
    %v863 = vsub.f32 %v831, %v847
    %v864 = vadd.f32 %v860, 1e-05
    %v865 = vadd.f32 %v861, 1e-05
    %v866 = vrsqrt.pop %v864
    %v867 = vmul.f32 %v866, %v864
    %v868 = vmul.f32 %v867, %v866
    %v869 = vmul.f32 0.5, %v868
    %v870 = vsub.f32 1.5, %v869
    %v871 = vmul.f32 %v866, %v870
    %vm872 = vweird.f32 %v864
    %vm873 = vweird.f32 %v866
    %vm874 = vmor %vm872, %vm873
    %v875 = vsel %vm874, %v866, %v871
    %v876 = vrsqrt.pop %v865
    %v877 = vmul.f32 %v876, %v865
    %v878 = vmul.f32 %v877, %v876
    %v879 = vmul.f32 0.5, %v878
    %v880 = vsub.f32 1.5, %v879
    %v881 = vmul.f32 %v876, %v880
    %vm882 = vweird.f32 %v865
    %vm883 = vweird.f32 %v876
    %vm884 = vmor %vm882, %vm883
    %v885 = vsel %vm884, %v876, %v881
    %v886 = vmul.f32 %v862, %v875
    %v887 = vmul.f32 %v863, %v885
    %v888 = vperm.slane %v84, 0
    %v889 = vmul.f32 %v886, %v888
    %v890 = vmul.f32 %v887, %v888
    %v891 = vperm.slane %v84, 1
    %v892 = vadd.f32 %v889, %v891
    %v893 = vadd.f32 %v890, %v891
    %v894 = vld [vmem:[%s5] sm:$0xff]
    %v895 = vld [vmem:[%s5 + $0x8] sm:$0xff]
    %v896 = vld [vmem:[%s5 + $0x10] sm:$0xff]
    %v897 = vld [vmem:[%s5 + $0x18] sm:$0xff]
    %v899 = vsel %vm89, %v892, 0
    %v902 = vsel %vm89, %v893, 0
    %904 = vmatpush.msra.mxu0 0.0
    %905 = vmatpush.msra.mxu0 0.0
    %906 = vmatpush.msra.mxu0 0.0
    %907 = vmatpush.msra.mxu0 0.0
    %908 = vmatpush.msra.mxu0 0.0
    %909 = vmatpush.msra.mxu0 0.0
    %910 = vmatpush.msra.mxu0 0.0
    %911 = vmatpush.msra.mxu0 0.0
    %912 = vmatpush.msra.mxu0 0.0
    %913 = vmatpush.msra.mxu0 0.0
    %914 = vmatpush.msra.mxu0 0.0
    %915 = vmatpush.msra.mxu0 0.0
    %916 = vmatpush.msra.mxu0 %v897
    %917 = vmatpush.msra.mxu0 %v896
    %918 = vmatpush.msra.mxu0 %v895
    %919 = vmatpush.msra.mxu0 %v894
    %920 = vmatmul.f32.gmra.mxu0 %v899
    %v921 = vpop.f32.mrf.mxu0
    %v922 = vadd.f32 0.0, %v921
    %923 = vmatmul.f32.gmra.mxu0 %v902
    %v924 = vpop.f32.mrf.mxu0
    %v925 = vadd.f32 0.0, %v924
    %926 = vdwg.mxu0
    %v927 = vmax.f32 %v922, 0.0
    %v928 = vmax.f32 %v925, 0.0
    %v929 = vld [vmem:[%s6] sm:$0xff]
    %v930 = vld [vmem:[%s6 + $0x8] sm:$0xff]
    %v931 = vld [vmem:[%s6 + $0x10] sm:$0xff]
    %v932 = vld [vmem:[%s6 + $0x18] sm:$0xff]
    %v933 = vld [vmem:[%s6 + $0x20] sm:$0xff]
    %v934 = vld [vmem:[%s6 + $0x28] sm:$0xff]
    %v935 = vld [vmem:[%s6 + $0x30] sm:$0xff]
    %v936 = vld [vmem:[%s6 + $0x38] sm:$0xff]
    %vm937 = vcmask 523264
    %v939 = vsel %vm937, %v927, 0
    %v942 = vsel %vm937, %v928, 0
    %944 = vmatpush.msra.mxu0 0.0
    %945 = vmatpush.msra.mxu0 0.0
    %946 = vmatpush.msra.mxu0 0.0
    %947 = vmatpush.msra.mxu0 0.0
    %948 = vmatpush.msra.mxu0 0.0
    %949 = vmatpush.msra.mxu0 0.0
    %950 = vmatpush.msra.mxu0 0.0
    %951 = vmatpush.msra.mxu0 0.0
    %952 = vmatpush.msra.mxu0 %v936
    %953 = vmatpush.msra.mxu0 %v935
    %954 = vmatpush.msra.mxu0 %v934
    %955 = vmatpush.msra.mxu0 %v933
    %956 = vmatpush.msra.mxu0 %v932
    %957 = vmatpush.msra.mxu0 %v931
    %958 = vmatpush.msra.mxu0 %v930
    %959 = vmatpush.msra.mxu0 %v929
    %960 = vmatmul.f32.gmra.mxu0 %v939
    %v961 = vpop.f32.mrf.mxu0
    %v962 = vadd.f32 %v892, %v961
    %963 = vmatmul.f32.gmra.mxu0 %v942
    %v964 = vpop.f32.mrf.mxu0
    %v965 = vadd.f32 %v893, %v964
    %966 = vdwg.mxu0
    %v967 = vsel %vm89, %v962, 0.0
    %968 = vadd.xlane.f32.xlu0 %v967
    %v969 = vpop.xlane.xlu0 %968
    %v970 = vsel %vm89, %v965, 0.0
    %971 = vadd.xlane.f32.xlu0 %v970
    %v972 = vpop.xlane.xlu0 %971
    %v973 = vmul.f32 %v969, %v845
    %v974 = vmul.f32 %v972, %v845
    %v975 = vmul.f32 %v962, %v962
    %v976 = vmul.f32 %v965, %v965
    %v977 = vsel %vm89, %v975, 0.0
    %978 = vadd.xlane.f32.xlu0 %v977
    %v979 = vpop.xlane.xlu0 %978
    %v980 = vsel %vm89, %v976, 0.0
    %981 = vadd.xlane.f32.xlu0 %v980
    %v982 = vpop.xlane.xlu0 %981
    %v983 = vmul.f32 %v979, %v845
    %v984 = vmul.f32 %v982, %v845
    %v985 = vmul.f32 %v973, %v973
    %v986 = vmul.f32 %v974, %v974
    %v987 = vsub.f32 %v983, %v985
    %v988 = vsub.f32 %v984, %v986
    %v989 = vsub.f32 %v962, %v973
    %v990 = vsub.f32 %v965, %v974
    %v991 = vadd.f32 %v987, 1e-05
    %v992 = vadd.f32 %v988, 1e-05
    %v993 = vrsqrt.pop %v991
    %v994 = vmul.f32 %v993, %v991
    %v995 = vmul.f32 %v994, %v993
    %v996 = vmul.f32 0.5, %v995
    %v997 = vsub.f32 1.5, %v996
    %v998 = vmul.f32 %v993, %v997
    %vm999 = vweird.f32 %v991
    %vm1000 = vweird.f32 %v993
    %vm1001 = vmor %vm999, %vm1000
    %v1002 = vsel %vm1001, %v993, %v998
    %v1003 = vrsqrt.pop %v992
    %v1004 = vmul.f32 %v1003, %v992
    %v1005 = vmul.f32 %v1004, %v1003
    %v1006 = vmul.f32 0.5, %v1005
    %v1007 = vsub.f32 1.5, %v1006
    %v1008 = vmul.f32 %v1003, %v1007
    %vm1009 = vweird.f32 %v992
    %vm1010 = vweird.f32 %v1003
    %vm1011 = vmor %vm1009, %vm1010
    %v1012 = vsel %vm1011, %v1003, %v1008
    %v1013 = vmul.f32 %v989, %v1002
    %v1014 = vmul.f32 %v990, %v1012
    %v1015 = vperm.slane %v84, 2
    %v1016 = vmul.f32 %v1013, %v1015
    %v1017 = vmul.f32 %v1014, %v1015
    %v1018 = vperm.slane %v84, 3
    %v1019 = vadd.f32 %v1016, %v1018
    %v1020 = vadd.f32 %v1017, %v1018
    %s1021 = scalar_lea.vmem %s7, 4
    %v1022 = vld [vmem:[%s1021] sm:$0xf]
    %s1023 = scalar_lea.vmem %s3, 32
    %v1024 = vld [vmem:[%s1023] sm:$0xff]
    %v1025 = vld [vmem:[%s1023 + $0x8] sm:$0xff]
    %v1026 = vld [vmem:[%s1023 + $0x10] sm:$0xff]
    %v1027 = vld [vmem:[%s1023 + $0x18] sm:$0xff]
    %v1029 = vsel %vm89, %v1019, 0
    %v1032 = vsel %vm89, %v1020, 0
    %1034 = vmatpush.msra.mxu0 0.0
    %1035 = vmatpush.msra.mxu0 0.0
    %1036 = vmatpush.msra.mxu0 0.0
    %1037 = vmatpush.msra.mxu0 0.0
    %1038 = vmatpush.msra.mxu0 0.0
    %1039 = vmatpush.msra.mxu0 0.0
    %1040 = vmatpush.msra.mxu0 0.0
    %1041 = vmatpush.msra.mxu0 0.0
    %1042 = vmatpush.msra.mxu0 0.0
    %1043 = vmatpush.msra.mxu0 0.0
    %1044 = vmatpush.msra.mxu0 0.0
    %1045 = vmatpush.msra.mxu0 0.0
    %1046 = vmatpush.msra.mxu0 %v1027
    %1047 = vmatpush.msra.mxu0 %v1026
    %1048 = vmatpush.msra.mxu0 %v1025
    %1049 = vmatpush.msra.mxu0 %v1024
    %1050 = vmatmul.f32.gmra.mxu0 %v1029
    %v1051 = vpop.f32.mrf.mxu0
    %v1052 = vadd.f32 0.0, %v1051
    %1053 = vmatmul.f32.gmra.mxu0 %v1032
    %v1054 = vpop.f32.mrf.mxu0
    %v1055 = vadd.f32 0.0, %v1054
    %1056 = vdwg.mxu0
    %1058 = vrot.lane.b32.xlu0 %v1052, 120
    %v1059 = vpop.permute.xlu0 %1058
    %v1060 = vsel %vm122, %v1052, 0
    %v1062 = vsel %vm122, %v1059, 0
    %1064 = vmatpush.xpose.msra.mxu0 0.0
    %1065 = vmatpush.xpose.msra.mxu0 0.0
    %1066 = vmatpush.xpose.msra.mxu0 0.0
    %1067 = vmatpush.xpose.msra.mxu0 0.0
    %1068 = vmatpush.xpose.msra.mxu0 0.0
    %1069 = vmatpush.xpose.msra.mxu0 0.0
    %1070 = vmatpush.xpose.msra.mxu0 0.0
    %1071 = vmatpush.xpose.msra.mxu0 0.0
    %1072 = vmatpush.xpose.msra.mxu0 0.0
    %1073 = vmatpush.xpose.msra.mxu0 0.0
    %1074 = vmatpush.xpose.msra.mxu0 0.0
    %1075 = vmatpush.xpose.msra.mxu0 0.0
    %1076 = vmatpush.xpose.msra.mxu0 0.0
    %1077 = vmatpush.xpose.msra.mxu0 0.0
    %1078 = vmatpush.xpose.msra.mxu0 0.0
    %1079 = vmatpush.xpose.msra.mxu0 %v1062
    %1080 = vmatmul.f32.gmra.mxu0 %v1060
    %v1081 = vpop.f32.mrf.mxu0
    %v1082 = vadd.f32 %v82, %v1081
    %1083 = vdwg.mxu0
    %1085 = vrot.lane.b32.xlu0 %v1055, 120
    %v1086 = vpop.permute.xlu0 %1085
    %v1087 = vsel %vm122, %v1055, 0
    %v1089 = vsel %vm122, %v1086, 0
    %1091 = vmatpush.xpose.msra.mxu0 0.0
    %1092 = vmatpush.xpose.msra.mxu0 0.0
    %1093 = vmatpush.xpose.msra.mxu0 0.0
    %1094 = vmatpush.xpose.msra.mxu0 0.0
    %1095 = vmatpush.xpose.msra.mxu0 0.0
    %1096 = vmatpush.xpose.msra.mxu0 0.0
    %1097 = vmatpush.xpose.msra.mxu0 0.0
    %1098 = vmatpush.xpose.msra.mxu0 0.0
    %1099 = vmatpush.xpose.msra.mxu0 0.0
    %1100 = vmatpush.xpose.msra.mxu0 0.0
    %1101 = vmatpush.xpose.msra.mxu0 0.0
    %1102 = vmatpush.xpose.msra.mxu0 0.0
    %1103 = vmatpush.xpose.msra.mxu0 0.0
    %1104 = vmatpush.xpose.msra.mxu0 0.0
    %1105 = vmatpush.xpose.msra.mxu0 0.0
    %1106 = vmatpush.xpose.msra.mxu0 %v1089
    %1107 = vmatmul.f32.gmra.mxu0 %v1087
    %v1108 = vpop.f32.mrf.mxu0
    %v1109 = vadd.f32 %v83, %v1108
    %1110 = vdwg.mxu0
    %v1111 = vsel %vm122, %v1082, -inf
    %1112 = vmax.xlane.f32.xlu0 %v1111
    %v1113 = vpop.xlane.xlu0 %1112
    %v1114 = vsel %vm122, %v1109, -inf
    %1115 = vmax.xlane.f32.xlu0 %v1114
    %v1116 = vpop.xlane.xlu0 %1115
    %v1117 = vsub.f32 %v1082, %v1113
    %v1118 = vsub.f32 %v1109, %v1116
    %v1119 = vmul.f32 %v1117, 1.442695
    %v1120 = vpow.pop %v1119
    %v1121 = vmul.f32 %v1118, 1.442695
    %v1122 = vpow.pop %v1121
    %v1123 = vsel %vm122, %v1120, 0.0
    %1124 = vadd.xlane.f32.xlu0 %v1123
    %v1125 = vpop.xlane.xlu0 %1124
    %v1126 = vsel %vm122, %v1122, 0.0
    %1127 = vadd.xlane.f32.xlu0 %v1126
    %v1128 = vpop.xlane.xlu0 %1127
    %v1129 = vrcp.pop %v1125
    %v1130 = vmul.f32 %v1125, %v1129
    %v1131 = vsub.f32 1.0, %v1130
    %v1132 = vmul.f32 %v1129, %v1131
    %v1133 = vadd.f32 %v1129, %v1132
    %vm1134 = vweird.f32 %v1125
    %vm1135 = vweird.f32 %v1129
    %vm1136 = vmor %vm1134, %vm1135
    %v1137 = vsel %vm1136, %v1129, %v1133
    %v1138 = vand.u32 2147483647, %v1125
    %vm1139 = vcmp.eq.f32.partialorder %v1138, 8.507059e+37
    %v1140 = vand.u32 %v1125, 2147483648
    %v1141 = vor.u32 1.1754944e-38, %v1140
    %v1142 = vsel %vm1139, %v1141, %v1137
    %v1143 = vrcp.pop %v1128
    %v1144 = vmul.f32 %v1128, %v1143
    %v1145 = vsub.f32 1.0, %v1144
    %v1146 = vmul.f32 %v1143, %v1145
    %v1147 = vadd.f32 %v1143, %v1146
    %vm1148 = vweird.f32 %v1128
    %vm1149 = vweird.f32 %v1143
    %vm1150 = vmor %vm1148, %vm1149
    %v1151 = vsel %vm1150, %v1143, %v1147
    %v1152 = vand.u32 2147483647, %v1128
    %vm1153 = vcmp.eq.f32.partialorder %v1152, 8.507059e+37
    %v1154 = vand.u32 %v1128, 2147483648
    %v1155 = vor.u32 1.1754944e-38, %v1154
    %v1156 = vsel %vm1153, %v1155, %v1151
    %v1157 = vmul.f32 %v1120, %v1142
    %v1158 = vmul.f32 %v1122, %v1156
    %1159 = vrot.lane.b32.xlu0 %v1052, 112
    %v1160 = vpop.permute.xlu0 %1159
    %v1163 = vsel %vm122, %v1157, 0
    %1165 = vmatpush.msra.mxu0 0.0
    %1166 = vmatpush.msra.mxu0 0.0
    %1167 = vmatpush.msra.mxu0 0.0
    %1168 = vmatpush.msra.mxu0 0.0
    %1169 = vmatpush.msra.mxu0 0.0
    %1170 = vmatpush.msra.mxu0 0.0
    %1171 = vmatpush.msra.mxu0 0.0
    %1172 = vmatpush.msra.mxu0 0.0
    %1173 = vmatpush.msra.mxu0 0.0
    %1174 = vmatpush.msra.mxu0 0.0
    %1175 = vmatpush.msra.mxu0 0.0
    %1176 = vmatpush.msra.mxu0 0.0
    %1177 = vmatpush.msra.mxu0 0.0
    %1178 = vmatpush.msra.mxu0 0.0
    %1179 = vmatpush.msra.mxu0 0.0
    %1180 = vmatpush.msra.mxu0 %v1160
    %1181 = vmatmul.f32.gmra.mxu0 %v1163
    %v1182 = vpop.f32.mrf.mxu0
    %v1183 = vadd.f32 0.0, %v1182
    %1184 = vdwg.mxu0
    %1185 = vrot.lane.b32.xlu0 %v1055, 112
    %v1186 = vpop.permute.xlu0 %1185
    %v1189 = vsel %vm122, %v1158, 0
    %1191 = vmatpush.msra.mxu0 0.0
    %1192 = vmatpush.msra.mxu0 0.0
    %1193 = vmatpush.msra.mxu0 0.0
    %1194 = vmatpush.msra.mxu0 0.0
    %1195 = vmatpush.msra.mxu0 0.0
    %1196 = vmatpush.msra.mxu0 0.0
    %1197 = vmatpush.msra.mxu0 0.0
    %1198 = vmatpush.msra.mxu0 0.0
    %1199 = vmatpush.msra.mxu0 0.0
    %1200 = vmatpush.msra.mxu0 0.0
    %1201 = vmatpush.msra.mxu0 0.0
    %1202 = vmatpush.msra.mxu0 0.0
    %1203 = vmatpush.msra.mxu0 0.0
    %1204 = vmatpush.msra.mxu0 0.0
    %1205 = vmatpush.msra.mxu0 0.0
    %1206 = vmatpush.msra.mxu0 %v1186
    %1207 = vmatmul.f32.gmra.mxu0 %v1189
    %v1208 = vpop.f32.mrf.mxu0
    %v1209 = vadd.f32 0.0, %v1208
    %1210 = vdwg.mxu0
    %1211 = vrot.lane.b32.xlu0 %v1052, 104
    %v1212 = vpop.permute.xlu0 %1211
    %1213 = vrot.lane.b32.xlu0 %v1052, 96
    %v1214 = vpop.permute.xlu0 %1213
    %v1215 = vsel %vm122, %v1212, 0
    %v1217 = vsel %vm122, %v1214, 0
    %1219 = vmatpush.xpose.msra.mxu0 0.0
    %1220 = vmatpush.xpose.msra.mxu0 0.0
    %1221 = vmatpush.xpose.msra.mxu0 0.0
    %1222 = vmatpush.xpose.msra.mxu0 0.0
    %1223 = vmatpush.xpose.msra.mxu0 0.0
    %1224 = vmatpush.xpose.msra.mxu0 0.0
    %1225 = vmatpush.xpose.msra.mxu0 0.0
    %1226 = vmatpush.xpose.msra.mxu0 0.0
    %1227 = vmatpush.xpose.msra.mxu0 0.0
    %1228 = vmatpush.xpose.msra.mxu0 0.0
    %1229 = vmatpush.xpose.msra.mxu0 0.0
    %1230 = vmatpush.xpose.msra.mxu0 0.0
    %1231 = vmatpush.xpose.msra.mxu0 0.0
    %1232 = vmatpush.xpose.msra.mxu0 0.0
    %1233 = vmatpush.xpose.msra.mxu0 0.0
    %1234 = vmatpush.xpose.msra.mxu0 %v1217
    %1235 = vmatmul.f32.gmra.mxu0 %v1215
    %v1236 = vpop.f32.mrf.mxu0
    %v1237 = vadd.f32 %v82, %v1236
    %1238 = vdwg.mxu0
    %1239 = vrot.lane.b32.xlu0 %v1055, 104
    %v1240 = vpop.permute.xlu0 %1239
    %1241 = vrot.lane.b32.xlu0 %v1055, 96
    %v1242 = vpop.permute.xlu0 %1241
    %v1243 = vsel %vm122, %v1240, 0
    %v1245 = vsel %vm122, %v1242, 0
    %1247 = vmatpush.xpose.msra.mxu0 0.0
    %1248 = vmatpush.xpose.msra.mxu0 0.0
    %1249 = vmatpush.xpose.msra.mxu0 0.0
    %1250 = vmatpush.xpose.msra.mxu0 0.0
    %1251 = vmatpush.xpose.msra.mxu0 0.0
    %1252 = vmatpush.xpose.msra.mxu0 0.0
    %1253 = vmatpush.xpose.msra.mxu0 0.0
    %1254 = vmatpush.xpose.msra.mxu0 0.0
    %1255 = vmatpush.xpose.msra.mxu0 0.0
    %1256 = vmatpush.xpose.msra.mxu0 0.0
    %1257 = vmatpush.xpose.msra.mxu0 0.0
    %1258 = vmatpush.xpose.msra.mxu0 0.0
    %1259 = vmatpush.xpose.msra.mxu0 0.0
    %1260 = vmatpush.xpose.msra.mxu0 0.0
    %1261 = vmatpush.xpose.msra.mxu0 0.0
    %1262 = vmatpush.xpose.msra.mxu0 %v1245
    %1263 = vmatmul.f32.gmra.mxu0 %v1243
    %v1264 = vpop.f32.mrf.mxu0
    %v1265 = vadd.f32 %v83, %v1264
    %1266 = vdwg.mxu0
    %v1267 = vsel %vm122, %v1237, -inf
    %1268 = vmax.xlane.f32.xlu0 %v1267
    %v1269 = vpop.xlane.xlu0 %1268
    %v1270 = vsel %vm122, %v1265, -inf
    %1271 = vmax.xlane.f32.xlu0 %v1270
    %v1272 = vpop.xlane.xlu0 %1271
    %v1273 = vsub.f32 %v1237, %v1269
    %v1274 = vsub.f32 %v1265, %v1272
    %v1275 = vmul.f32 %v1273, 1.442695
    %v1276 = vpow.pop %v1275
    %v1277 = vmul.f32 %v1274, 1.442695
    %v1278 = vpow.pop %v1277
    %v1279 = vsel %vm122, %v1276, 0.0
    %1280 = vadd.xlane.f32.xlu0 %v1279
    %v1281 = vpop.xlane.xlu0 %1280
    %v1282 = vsel %vm122, %v1278, 0.0
    %1283 = vadd.xlane.f32.xlu0 %v1282
    %v1284 = vpop.xlane.xlu0 %1283
    %v1285 = vrcp.pop %v1281
    %v1286 = vmul.f32 %v1281, %v1285
    %v1287 = vsub.f32 1.0, %v1286
    %v1288 = vmul.f32 %v1285, %v1287
    %v1289 = vadd.f32 %v1285, %v1288
    %vm1290 = vweird.f32 %v1281
    %vm1291 = vweird.f32 %v1285
    %vm1292 = vmor %vm1290, %vm1291
    %v1293 = vsel %vm1292, %v1285, %v1289
    %v1294 = vand.u32 2147483647, %v1281
    %vm1295 = vcmp.eq.f32.partialorder %v1294, 8.507059e+37
    %v1296 = vand.u32 %v1281, 2147483648
    %v1297 = vor.u32 1.1754944e-38, %v1296
    %v1298 = vsel %vm1295, %v1297, %v1293
    %v1299 = vrcp.pop %v1284
    %v1300 = vmul.f32 %v1284, %v1299
    %v1301 = vsub.f32 1.0, %v1300
    %v1302 = vmul.f32 %v1299, %v1301
    %v1303 = vadd.f32 %v1299, %v1302
    %vm1304 = vweird.f32 %v1284
    %vm1305 = vweird.f32 %v1299
    %vm1306 = vmor %vm1304, %vm1305
    %v1307 = vsel %vm1306, %v1299, %v1303
    %v1308 = vand.u32 2147483647, %v1284
    %vm1309 = vcmp.eq.f32.partialorder %v1308, 8.507059e+37
    %v1310 = vand.u32 %v1284, 2147483648
    %v1311 = vor.u32 1.1754944e-38, %v1310
    %v1312 = vsel %vm1309, %v1311, %v1307
    %v1313 = vmul.f32 %v1276, %v1298
    %v1314 = vmul.f32 %v1278, %v1312
    %1315 = vrot.lane.b32.xlu0 %v1052, 88
    %v1316 = vpop.permute.xlu0 %1315
    %v1319 = vsel %vm122, %v1313, 0
    %1321 = vmatpush.msra.mxu0 0.0
    %1322 = vmatpush.msra.mxu0 0.0
    %1323 = vmatpush.msra.mxu0 0.0
    %1324 = vmatpush.msra.mxu0 0.0
    %1325 = vmatpush.msra.mxu0 0.0
    %1326 = vmatpush.msra.mxu0 0.0
    %1327 = vmatpush.msra.mxu0 0.0
    %1328 = vmatpush.msra.mxu0 0.0
    %1329 = vmatpush.msra.mxu0 0.0
    %1330 = vmatpush.msra.mxu0 0.0
    %1331 = vmatpush.msra.mxu0 0.0
    %1332 = vmatpush.msra.mxu0 0.0
    %1333 = vmatpush.msra.mxu0 0.0
    %1334 = vmatpush.msra.mxu0 0.0
    %1335 = vmatpush.msra.mxu0 0.0
    %1336 = vmatpush.msra.mxu0 %v1316
    %1337 = vmatmul.f32.gmra.mxu0 %v1319
    %v1338 = vpop.f32.mrf.mxu0
    %v1339 = vadd.f32 0.0, %v1338
    %1340 = vdwg.mxu0
    %1341 = vrot.lane.b32.xlu0 %v1055, 88
    %v1342 = vpop.permute.xlu0 %1341
    %v1345 = vsel %vm122, %v1314, 0
    %1347 = vmatpush.msra.mxu0 0.0
    %1348 = vmatpush.msra.mxu0 0.0
    %1349 = vmatpush.msra.mxu0 0.0
    %1350 = vmatpush.msra.mxu0 0.0
    %1351 = vmatpush.msra.mxu0 0.0
    %1352 = vmatpush.msra.mxu0 0.0
    %1353 = vmatpush.msra.mxu0 0.0
    %1354 = vmatpush.msra.mxu0 0.0
    %1355 = vmatpush.msra.mxu0 0.0
    %1356 = vmatpush.msra.mxu0 0.0
    %1357 = vmatpush.msra.mxu0 0.0
    %1358 = vmatpush.msra.mxu0 0.0
    %1359 = vmatpush.msra.mxu0 0.0
    %1360 = vmatpush.msra.mxu0 0.0
    %1361 = vmatpush.msra.mxu0 0.0
    %1362 = vmatpush.msra.mxu0 %v1342
    %1363 = vmatmul.f32.gmra.mxu0 %v1345
    %v1364 = vpop.f32.mrf.mxu0
    %v1365 = vadd.f32 0.0, %v1364
    %1366 = vdwg.mxu0
    %1367 = vrot.lane.b32.xlu0 %v1052, 80
    %v1368 = vpop.permute.xlu0 %1367
    %1369 = vrot.lane.b32.xlu0 %v1052, 72
    %v1370 = vpop.permute.xlu0 %1369
    %v1371 = vsel %vm122, %v1368, 0
    %v1373 = vsel %vm122, %v1370, 0
    %1375 = vmatpush.xpose.msra.mxu0 0.0
    %1376 = vmatpush.xpose.msra.mxu0 0.0
    %1377 = vmatpush.xpose.msra.mxu0 0.0
    %1378 = vmatpush.xpose.msra.mxu0 0.0
    %1379 = vmatpush.xpose.msra.mxu0 0.0
    %1380 = vmatpush.xpose.msra.mxu0 0.0
    %1381 = vmatpush.xpose.msra.mxu0 0.0
    %1382 = vmatpush.xpose.msra.mxu0 0.0
    %1383 = vmatpush.xpose.msra.mxu0 0.0
    %1384 = vmatpush.xpose.msra.mxu0 0.0
    %1385 = vmatpush.xpose.msra.mxu0 0.0
    %1386 = vmatpush.xpose.msra.mxu0 0.0
    %1387 = vmatpush.xpose.msra.mxu0 0.0
    %1388 = vmatpush.xpose.msra.mxu0 0.0
    %1389 = vmatpush.xpose.msra.mxu0 0.0
    %1390 = vmatpush.xpose.msra.mxu0 %v1373
    %1391 = vmatmul.f32.gmra.mxu0 %v1371
    %v1392 = vpop.f32.mrf.mxu0
    %v1393 = vadd.f32 %v82, %v1392
    %1394 = vdwg.mxu0
    %1395 = vrot.lane.b32.xlu0 %v1055, 80
    %v1396 = vpop.permute.xlu0 %1395
    %1397 = vrot.lane.b32.xlu0 %v1055, 72
    %v1398 = vpop.permute.xlu0 %1397
    %v1399 = vsel %vm122, %v1396, 0
    %v1401 = vsel %vm122, %v1398, 0
    %1403 = vmatpush.xpose.msra.mxu0 0.0
    %1404 = vmatpush.xpose.msra.mxu0 0.0
    %1405 = vmatpush.xpose.msra.mxu0 0.0
    %1406 = vmatpush.xpose.msra.mxu0 0.0
    %1407 = vmatpush.xpose.msra.mxu0 0.0
    %1408 = vmatpush.xpose.msra.mxu0 0.0
    %1409 = vmatpush.xpose.msra.mxu0 0.0
    %1410 = vmatpush.xpose.msra.mxu0 0.0
    %1411 = vmatpush.xpose.msra.mxu0 0.0
    %1412 = vmatpush.xpose.msra.mxu0 0.0
    %1413 = vmatpush.xpose.msra.mxu0 0.0
    %1414 = vmatpush.xpose.msra.mxu0 0.0
    %1415 = vmatpush.xpose.msra.mxu0 0.0
    %1416 = vmatpush.xpose.msra.mxu0 0.0
    %1417 = vmatpush.xpose.msra.mxu0 0.0
    %1418 = vmatpush.xpose.msra.mxu0 %v1401
    %1419 = vmatmul.f32.gmra.mxu0 %v1399
    %v1420 = vpop.f32.mrf.mxu0
    %v1421 = vadd.f32 %v83, %v1420
    %1422 = vdwg.mxu0
    %v1423 = vsel %vm122, %v1393, -inf
    %1424 = vmax.xlane.f32.xlu0 %v1423
    %v1425 = vpop.xlane.xlu0 %1424
    %v1426 = vsel %vm122, %v1421, -inf
    %1427 = vmax.xlane.f32.xlu0 %v1426
    %v1428 = vpop.xlane.xlu0 %1427
    %v1429 = vsub.f32 %v1393, %v1425
    %v1430 = vsub.f32 %v1421, %v1428
    %v1431 = vmul.f32 %v1429, 1.442695
    %v1432 = vpow.pop %v1431
    %v1433 = vmul.f32 %v1430, 1.442695
    %v1434 = vpow.pop %v1433
    %v1435 = vsel %vm122, %v1432, 0.0
    %1436 = vadd.xlane.f32.xlu0 %v1435
    %v1437 = vpop.xlane.xlu0 %1436
    %v1438 = vsel %vm122, %v1434, 0.0
    %1439 = vadd.xlane.f32.xlu0 %v1438
    %v1440 = vpop.xlane.xlu0 %1439
    %v1441 = vrcp.pop %v1437
    %v1442 = vmul.f32 %v1437, %v1441
    %v1443 = vsub.f32 1.0, %v1442
    %v1444 = vmul.f32 %v1441, %v1443
    %v1445 = vadd.f32 %v1441, %v1444
    %vm1446 = vweird.f32 %v1437
    %vm1447 = vweird.f32 %v1441
    %vm1448 = vmor %vm1446, %vm1447
    %v1449 = vsel %vm1448, %v1441, %v1445
    %v1450 = vand.u32 2147483647, %v1437
    %vm1451 = vcmp.eq.f32.partialorder %v1450, 8.507059e+37
    %v1452 = vand.u32 %v1437, 2147483648
    %v1453 = vor.u32 1.1754944e-38, %v1452
    %v1454 = vsel %vm1451, %v1453, %v1449
    %v1455 = vrcp.pop %v1440
    %v1456 = vmul.f32 %v1440, %v1455
    %v1457 = vsub.f32 1.0, %v1456
    %v1458 = vmul.f32 %v1455, %v1457
    %v1459 = vadd.f32 %v1455, %v1458
    %vm1460 = vweird.f32 %v1440
    %vm1461 = vweird.f32 %v1455
    %vm1462 = vmor %vm1460, %vm1461
    %v1463 = vsel %vm1462, %v1455, %v1459
    %v1464 = vand.u32 2147483647, %v1440
    %vm1465 = vcmp.eq.f32.partialorder %v1464, 8.507059e+37
    %v1466 = vand.u32 %v1440, 2147483648
    %v1467 = vor.u32 1.1754944e-38, %v1466
    %v1468 = vsel %vm1465, %v1467, %v1463
    %v1469 = vmul.f32 %v1432, %v1454
    %v1470 = vmul.f32 %v1434, %v1468
    %1471 = vrot.lane.b32.xlu0 %v1052, 64
    %v1472 = vpop.permute.xlu0 %1471
    %v1475 = vsel %vm122, %v1469, 0
    %1477 = vmatpush.msra.mxu0 0.0
    %1478 = vmatpush.msra.mxu0 0.0
    %1479 = vmatpush.msra.mxu0 0.0
    %1480 = vmatpush.msra.mxu0 0.0
    %1481 = vmatpush.msra.mxu0 0.0
    %1482 = vmatpush.msra.mxu0 0.0
    %1483 = vmatpush.msra.mxu0 0.0
    %1484 = vmatpush.msra.mxu0 0.0
    %1485 = vmatpush.msra.mxu0 0.0
    %1486 = vmatpush.msra.mxu0 0.0
    %1487 = vmatpush.msra.mxu0 0.0
    %1488 = vmatpush.msra.mxu0 0.0
    %1489 = vmatpush.msra.mxu0 0.0
    %1490 = vmatpush.msra.mxu0 0.0
    %1491 = vmatpush.msra.mxu0 0.0
    %1492 = vmatpush.msra.mxu0 %v1472
    %1493 = vmatmul.f32.gmra.mxu0 %v1475
    %v1494 = vpop.f32.mrf.mxu0
    %v1495 = vadd.f32 0.0, %v1494
    %1496 = vdwg.mxu0
    %1497 = vrot.lane.b32.xlu0 %v1055, 64
    %v1498 = vpop.permute.xlu0 %1497
    %v1501 = vsel %vm122, %v1470, 0
    %1503 = vmatpush.msra.mxu0 0.0
    %1504 = vmatpush.msra.mxu0 0.0
    %1505 = vmatpush.msra.mxu0 0.0
    %1506 = vmatpush.msra.mxu0 0.0
    %1507 = vmatpush.msra.mxu0 0.0
    %1508 = vmatpush.msra.mxu0 0.0
    %1509 = vmatpush.msra.mxu0 0.0
    %1510 = vmatpush.msra.mxu0 0.0
    %1511 = vmatpush.msra.mxu0 0.0
    %1512 = vmatpush.msra.mxu0 0.0
    %1513 = vmatpush.msra.mxu0 0.0
    %1514 = vmatpush.msra.mxu0 0.0
    %1515 = vmatpush.msra.mxu0 0.0
    %1516 = vmatpush.msra.mxu0 0.0
    %1517 = vmatpush.msra.mxu0 0.0
    %1518 = vmatpush.msra.mxu0 %v1498
    %1519 = vmatmul.f32.gmra.mxu0 %v1501
    %v1520 = vpop.f32.mrf.mxu0
    %v1521 = vadd.f32 0.0, %v1520
    %1522 = vdwg.mxu0
    %1523 = vrot.lane.b32.xlu0 %v1052, 56
    %v1524 = vpop.permute.xlu0 %1523
    %1525 = vrot.lane.b32.xlu0 %v1052, 48
    %v1526 = vpop.permute.xlu0 %1525
    %v1527 = vsel %vm122, %v1524, 0
    %v1529 = vsel %vm122, %v1526, 0
    %1531 = vmatpush.xpose.msra.mxu0 0.0
    %1532 = vmatpush.xpose.msra.mxu0 0.0
    %1533 = vmatpush.xpose.msra.mxu0 0.0
    %1534 = vmatpush.xpose.msra.mxu0 0.0
    %1535 = vmatpush.xpose.msra.mxu0 0.0
    %1536 = vmatpush.xpose.msra.mxu0 0.0
    %1537 = vmatpush.xpose.msra.mxu0 0.0
    %1538 = vmatpush.xpose.msra.mxu0 0.0
    %1539 = vmatpush.xpose.msra.mxu0 0.0
    %1540 = vmatpush.xpose.msra.mxu0 0.0
    %1541 = vmatpush.xpose.msra.mxu0 0.0
    %1542 = vmatpush.xpose.msra.mxu0 0.0
    %1543 = vmatpush.xpose.msra.mxu0 0.0
    %1544 = vmatpush.xpose.msra.mxu0 0.0
    %1545 = vmatpush.xpose.msra.mxu0 0.0
    %1546 = vmatpush.xpose.msra.mxu0 %v1529
    %1547 = vmatmul.f32.gmra.mxu0 %v1527
    %v1548 = vpop.f32.mrf.mxu0
    %v1549 = vadd.f32 %v82, %v1548
    %1550 = vdwg.mxu0
    %1551 = vrot.lane.b32.xlu0 %v1055, 56
    %v1552 = vpop.permute.xlu0 %1551
    %1553 = vrot.lane.b32.xlu0 %v1055, 48
    %v1554 = vpop.permute.xlu0 %1553
    %v1555 = vsel %vm122, %v1552, 0
    %v1557 = vsel %vm122, %v1554, 0
    %1559 = vmatpush.xpose.msra.mxu0 0.0
    %1560 = vmatpush.xpose.msra.mxu0 0.0
    %1561 = vmatpush.xpose.msra.mxu0 0.0
    %1562 = vmatpush.xpose.msra.mxu0 0.0
    %1563 = vmatpush.xpose.msra.mxu0 0.0
    %1564 = vmatpush.xpose.msra.mxu0 0.0
    %1565 = vmatpush.xpose.msra.mxu0 0.0
    %1566 = vmatpush.xpose.msra.mxu0 0.0
    %1567 = vmatpush.xpose.msra.mxu0 0.0
    %1568 = vmatpush.xpose.msra.mxu0 0.0
    %1569 = vmatpush.xpose.msra.mxu0 0.0
    %1570 = vmatpush.xpose.msra.mxu0 0.0
    %1571 = vmatpush.xpose.msra.mxu0 0.0
    %1572 = vmatpush.xpose.msra.mxu0 0.0
    %1573 = vmatpush.xpose.msra.mxu0 0.0
    %1574 = vmatpush.xpose.msra.mxu0 %v1557
    %1575 = vmatmul.f32.gmra.mxu0 %v1555
    %v1576 = vpop.f32.mrf.mxu0
    %v1577 = vadd.f32 %v83, %v1576
    %1578 = vdwg.mxu0
    %v1579 = vsel %vm122, %v1549, -inf
    %1580 = vmax.xlane.f32.xlu0 %v1579
    %v1581 = vpop.xlane.xlu0 %1580
    %v1582 = vsel %vm122, %v1577, -inf
    %1583 = vmax.xlane.f32.xlu0 %v1582
    %v1584 = vpop.xlane.xlu0 %1583
    %v1585 = vsub.f32 %v1549, %v1581
    %v1586 = vsub.f32 %v1577, %v1584
    %v1587 = vmul.f32 %v1585, 1.442695
    %v1588 = vpow.pop %v1587
    %v1589 = vmul.f32 %v1586, 1.442695
    %v1590 = vpow.pop %v1589
    %v1591 = vsel %vm122, %v1588, 0.0
    %1592 = vadd.xlane.f32.xlu0 %v1591
    %v1593 = vpop.xlane.xlu0 %1592
    %v1594 = vsel %vm122, %v1590, 0.0
    %1595 = vadd.xlane.f32.xlu0 %v1594
    %v1596 = vpop.xlane.xlu0 %1595
    %v1597 = vrcp.pop %v1593
    %v1598 = vmul.f32 %v1593, %v1597
    %v1599 = vsub.f32 1.0, %v1598
    %v1600 = vmul.f32 %v1597, %v1599
    %v1601 = vadd.f32 %v1597, %v1600
    %vm1602 = vweird.f32 %v1593
    %vm1603 = vweird.f32 %v1597
    %vm1604 = vmor %vm1602, %vm1603
    %v1605 = vsel %vm1604, %v1597, %v1601
    %v1606 = vand.u32 2147483647, %v1593
    %vm1607 = vcmp.eq.f32.partialorder %v1606, 8.507059e+37
    %v1608 = vand.u32 %v1593, 2147483648
    %v1609 = vor.u32 1.1754944e-38, %v1608
    %v1610 = vsel %vm1607, %v1609, %v1605
    %v1611 = vrcp.pop %v1596
    %v1612 = vmul.f32 %v1596, %v1611
    %v1613 = vsub.f32 1.0, %v1612
    %v1614 = vmul.f32 %v1611, %v1613
    %v1615 = vadd.f32 %v1611, %v1614
    %vm1616 = vweird.f32 %v1596
    %vm1617 = vweird.f32 %v1611
    %vm1618 = vmor %vm1616, %vm1617
    %v1619 = vsel %vm1618, %v1611, %v1615
    %v1620 = vand.u32 2147483647, %v1596
    %vm1621 = vcmp.eq.f32.partialorder %v1620, 8.507059e+37
    %v1622 = vand.u32 %v1596, 2147483648
    %v1623 = vor.u32 1.1754944e-38, %v1622
    %v1624 = vsel %vm1621, %v1623, %v1619
    %v1625 = vmul.f32 %v1588, %v1610
    %v1626 = vmul.f32 %v1590, %v1624
    %1627 = vrot.lane.b32.xlu0 %v1052, 40
    %v1628 = vpop.permute.xlu0 %1627
    %v1631 = vsel %vm122, %v1625, 0
    %1633 = vmatpush.msra.mxu0 0.0
    %1634 = vmatpush.msra.mxu0 0.0
    %1635 = vmatpush.msra.mxu0 0.0
    %1636 = vmatpush.msra.mxu0 0.0
    %1637 = vmatpush.msra.mxu0 0.0
    %1638 = vmatpush.msra.mxu0 0.0
    %1639 = vmatpush.msra.mxu0 0.0
    %1640 = vmatpush.msra.mxu0 0.0
    %1641 = vmatpush.msra.mxu0 0.0
    %1642 = vmatpush.msra.mxu0 0.0
    %1643 = vmatpush.msra.mxu0 0.0
    %1644 = vmatpush.msra.mxu0 0.0
    %1645 = vmatpush.msra.mxu0 0.0
    %1646 = vmatpush.msra.mxu0 0.0
    %1647 = vmatpush.msra.mxu0 0.0
    %1648 = vmatpush.msra.mxu0 %v1628
    %1649 = vmatmul.f32.gmra.mxu0 %v1631
    %v1650 = vpop.f32.mrf.mxu0
    %v1651 = vadd.f32 0.0, %v1650
    %1652 = vdwg.mxu0
    %1653 = vrot.lane.b32.xlu0 %v1055, 40
    %v1654 = vpop.permute.xlu0 %1653
    %v1657 = vsel %vm122, %v1626, 0
    %1659 = vmatpush.msra.mxu0 0.0
    %1660 = vmatpush.msra.mxu0 0.0
    %1661 = vmatpush.msra.mxu0 0.0
    %1662 = vmatpush.msra.mxu0 0.0
    %1663 = vmatpush.msra.mxu0 0.0
    %1664 = vmatpush.msra.mxu0 0.0
    %1665 = vmatpush.msra.mxu0 0.0
    %1666 = vmatpush.msra.mxu0 0.0
    %1667 = vmatpush.msra.mxu0 0.0
    %1668 = vmatpush.msra.mxu0 0.0
    %1669 = vmatpush.msra.mxu0 0.0
    %1670 = vmatpush.msra.mxu0 0.0
    %1671 = vmatpush.msra.mxu0 0.0
    %1672 = vmatpush.msra.mxu0 0.0
    %1673 = vmatpush.msra.mxu0 0.0
    %1674 = vmatpush.msra.mxu0 %v1654
    %1675 = vmatmul.f32.gmra.mxu0 %v1657
    %v1676 = vpop.f32.mrf.mxu0
    %v1677 = vadd.f32 0.0, %v1676
    %1678 = vdwg.mxu0
    %1679 = vrot.lane.b32.xlu0 %v1313, 8
    %v1680 = vpop.permute.xlu0 %1679
    %1681 = vrot.lane.b32.xlu0 %v1314, 8
    %v1682 = vpop.permute.xlu0 %1681
    %1685 = vrot.lane.b32.xlu0 %v1469, 16
    %v1686 = vpop.permute.xlu0 %1685
    %1687 = vrot.lane.b32.xlu0 %v1470, 16
    %v1688 = vpop.permute.xlu0 %1687
    %1691 = vrot.lane.b32.xlu0 %v1625, 24
    %v1692 = vpop.permute.xlu0 %1691
    %1693 = vrot.lane.b32.xlu0 %v1626, 24
    %v1694 = vpop.permute.xlu0 %1693
    %v1697 = vsel %vm122, %v1157, %v1680
    %v1698 = vsel %vm122, %v1158, %v1682
    %v1699 = vsel %vm762, %v1697, %v1686
    %v1700 = vsel %vm762, %v1698, %v1688
    %v1701 = vsel %vm765, %v1699, %v1692
    %v1702 = vsel %vm765, %v1700, %v1694
    %s1703 = scalar_lea.vmem [#allocation8], 16
    %1704 = vst.msk [vmem:[%s1703] sm:$0xff] %vm89, %v1701
    %1705 = vst.msk [vmem:[%s1703 + $0x8] sm:$0xff] %vm89, %v1702
    %1708 = vrot.lane.b32.xlu0 %v1339, 8
    %v1709 = vpop.permute.xlu0 %1708
    %1710 = vrot.lane.b32.xlu0 %v1365, 8
    %v1711 = vpop.permute.xlu0 %1710
    %1716 = vrot.lane.b32.xlu0 %v1495, 16
    %v1717 = vpop.permute.xlu0 %1716
    %1718 = vrot.lane.b32.xlu0 %v1521, 16
    %v1719 = vpop.permute.xlu0 %1718
    %1724 = vrot.lane.b32.xlu0 %v1651, 24
    %v1725 = vpop.permute.xlu0 %1724
    %1726 = vrot.lane.b32.xlu0 %v1677, 24
    %v1727 = vpop.permute.xlu0 %1726
    %v1730 = vsel %vm122, %v1183, %v1709
    %v1731 = vsel %vm122, %v1209, %v1711
    %v1732 = vsel %vm762, %v1730, %v1717
    %v1733 = vsel %vm762, %v1731, %v1719
    %v1734 = vsel %vm765, %v1732, %v1725
    %v1735 = vsel %vm765, %v1733, %v1727
    %s1736 = scalar_lea.vmem %s4, 32
    %v1737 = vld [vmem:[%s1736] sm:$0xff]
    %v1738 = vld [vmem:[%s1736 + $0x8] sm:$0xff]
    %v1739 = vld [vmem:[%s1736 + $0x10] sm:$0xff]
    %v1740 = vld [vmem:[%s1736 + $0x18] sm:$0xff]
    %v1742 = vsel %vm89, %v1734, 0
    %v1745 = vsel %vm89, %v1735, 0
    %1747 = vmatpush.msra.mxu0 0.0
    %1748 = vmatpush.msra.mxu0 0.0
    %1749 = vmatpush.msra.mxu0 0.0
    %1750 = vmatpush.msra.mxu0 0.0
    %1751 = vmatpush.msra.mxu0 0.0
    %1752 = vmatpush.msra.mxu0 0.0
    %1753 = vmatpush.msra.mxu0 0.0
    %1754 = vmatpush.msra.mxu0 0.0
    %1755 = vmatpush.msra.mxu0 0.0
    %1756 = vmatpush.msra.mxu0 0.0
    %1757 = vmatpush.msra.mxu0 0.0
    %1758 = vmatpush.msra.mxu0 0.0
    %1759 = vmatpush.msra.mxu0 %v1740
    %1760 = vmatpush.msra.mxu0 %v1739
    %1761 = vmatpush.msra.mxu0 %v1738
    %1762 = vmatpush.msra.mxu0 %v1737
    %1763 = vmatmul.f32.gmra.mxu0 %v1742
    %v1764 = vpop.f32.mrf.mxu0
    %v1765 = vadd.f32 %v1019, %v1764
    %1766 = vmatmul.f32.gmra.mxu0 %v1745
    %v1767 = vpop.f32.mrf.mxu0
    %v1768 = vadd.f32 %v1020, %v1767
    %1769 = vdwg.mxu0
    %v1770 = vsel %vm89, %v1765, 0.0
    %1771 = vadd.xlane.f32.xlu0 %v1770
    %v1772 = vpop.xlane.xlu0 %1771
    %v1773 = vsel %vm89, %v1768, 0.0
    %1774 = vadd.xlane.f32.xlu0 %v1773
    %v1775 = vpop.xlane.xlu0 %1774
    %v1776 = vmul.f32 %v1772, %v845
    %v1777 = vmul.f32 %v1775, %v845
    %v1778 = vmul.f32 %v1765, %v1765
    %v1779 = vmul.f32 %v1768, %v1768
    %v1780 = vsel %vm89, %v1778, 0.0
    %1781 = vadd.xlane.f32.xlu0 %v1780
    %v1782 = vpop.xlane.xlu0 %1781
    %v1783 = vsel %vm89, %v1779, 0.0
    %1784 = vadd.xlane.f32.xlu0 %v1783
    %v1785 = vpop.xlane.xlu0 %1784
    %v1786 = vmul.f32 %v1782, %v845
    %v1787 = vmul.f32 %v1785, %v845
    %v1788 = vmul.f32 %v1776, %v1776
    %v1789 = vmul.f32 %v1777, %v1777
    %v1790 = vsub.f32 %v1786, %v1788
    %v1791 = vsub.f32 %v1787, %v1789
    %v1792 = vsub.f32 %v1765, %v1776
    %v1793 = vsub.f32 %v1768, %v1777
    %v1794 = vadd.f32 %v1790, 1e-05
    %v1795 = vadd.f32 %v1791, 1e-05
    %v1796 = vrsqrt.pop %v1794
    %v1797 = vmul.f32 %v1796, %v1794
    %v1798 = vmul.f32 %v1797, %v1796
    %v1799 = vmul.f32 0.5, %v1798
    %v1800 = vsub.f32 1.5, %v1799
    %v1801 = vmul.f32 %v1796, %v1800
    %vm1802 = vweird.f32 %v1794
    %vm1803 = vweird.f32 %v1796
    %vm1804 = vmor %vm1802, %vm1803
    %v1805 = vsel %vm1804, %v1796, %v1801
    %v1806 = vrsqrt.pop %v1795
    %v1807 = vmul.f32 %v1806, %v1795
    %v1808 = vmul.f32 %v1807, %v1806
    %v1809 = vmul.f32 0.5, %v1808
    %v1810 = vsub.f32 1.5, %v1809
    %v1811 = vmul.f32 %v1806, %v1810
    %vm1812 = vweird.f32 %v1795
    %vm1813 = vweird.f32 %v1806
    %vm1814 = vmor %vm1812, %vm1813
    %v1815 = vsel %vm1814, %v1806, %v1811
    %v1816 = vmul.f32 %v1792, %v1805
    %v1817 = vmul.f32 %v1793, %v1815
    %v1818 = vperm.slane %v1022, 0
    %v1819 = vmul.f32 %v1816, %v1818
    %v1820 = vmul.f32 %v1817, %v1818
    %v1821 = vperm.slane %v1022, 1
    %v1822 = vadd.f32 %v1819, %v1821
    %v1823 = vadd.f32 %v1820, %v1821
    %s1824 = scalar_lea.vmem %s5, 32
    %v1825 = vld [vmem:[%s1824] sm:$0xff]
    %v1826 = vld [vmem:[%s1824 + $0x8] sm:$0xff]
    %v1827 = vld [vmem:[%s1824 + $0x10] sm:$0xff]
    %v1828 = vld [vmem:[%s1824 + $0x18] sm:$0xff]
    %v1830 = vsel %vm89, %v1822, 0
    %v1833 = vsel %vm89, %v1823, 0
    %1835 = vmatpush.msra.mxu0 0.0
    %1836 = vmatpush.msra.mxu0 0.0
    %1837 = vmatpush.msra.mxu0 0.0
    %1838 = vmatpush.msra.mxu0 0.0
    %1839 = vmatpush.msra.mxu0 0.0
    %1840 = vmatpush.msra.mxu0 0.0
    %1841 = vmatpush.msra.mxu0 0.0
    %1842 = vmatpush.msra.mxu0 0.0
    %1843 = vmatpush.msra.mxu0 0.0
    %1844 = vmatpush.msra.mxu0 0.0
    %1845 = vmatpush.msra.mxu0 0.0
    %1846 = vmatpush.msra.mxu0 0.0
    %1847 = vmatpush.msra.mxu0 %v1828
    %1848 = vmatpush.msra.mxu0 %v1827
    %1849 = vmatpush.msra.mxu0 %v1826
    %1850 = vmatpush.msra.mxu0 %v1825
    %1851 = vmatmul.f32.gmra.mxu0 %v1830
    %v1852 = vpop.f32.mrf.mxu0
    %v1853 = vadd.f32 0.0, %v1852
    %1854 = vmatmul.f32.gmra.mxu0 %v1833
    %v1855 = vpop.f32.mrf.mxu0
    %v1856 = vadd.f32 0.0, %v1855
    %1857 = vdwg.mxu0
    %v1858 = vmax.f32 %v1853, 0.0
    %v1859 = vmax.f32 %v1856, 0.0
    %s1860 = scalar_lea.vmem %s6, 64
    %v1861 = vld [vmem:[%s1860] sm:$0xff]
    %v1862 = vld [vmem:[%s1860 + $0x8] sm:$0xff]
    %v1863 = vld [vmem:[%s1860 + $0x10] sm:$0xff]
    %v1864 = vld [vmem:[%s1860 + $0x18] sm:$0xff]
    %v1865 = vld [vmem:[%s1860 + $0x20] sm:$0xff]
    %v1866 = vld [vmem:[%s1860 + $0x28] sm:$0xff]
    %v1867 = vld [vmem:[%s1860 + $0x30] sm:$0xff]
    %v1868 = vld [vmem:[%s1860 + $0x38] sm:$0xff]
    %v1870 = vsel %vm937, %v1858, 0
    %v1873 = vsel %vm937, %v1859, 0
    %1875 = vmatpush.msra.mxu0 0.0
    %1876 = vmatpush.msra.mxu0 0.0
    %1877 = vmatpush.msra.mxu0 0.0
    %1878 = vmatpush.msra.mxu0 0.0
    %1879 = vmatpush.msra.mxu0 0.0
    %1880 = vmatpush.msra.mxu0 0.0
    %1881 = vmatpush.msra.mxu0 0.0
    %1882 = vmatpush.msra.mxu0 0.0
    %1883 = vmatpush.msra.mxu0 %v1868
    %1884 = vmatpush.msra.mxu0 %v1867
    %1885 = vmatpush.msra.mxu0 %v1866
    %1886 = vmatpush.msra.mxu0 %v1865
    %1887 = vmatpush.msra.mxu0 %v1864
    %1888 = vmatpush.msra.mxu0 %v1863
    %1889 = vmatpush.msra.mxu0 %v1862
    %1890 = vmatpush.msra.mxu0 %v1861
    %1891 = vmatmul.f32.gmra.mxu0 %v1870
    %v1892 = vpop.f32.mrf.mxu0
    %v1893 = vadd.f32 %v1822, %v1892
    %1894 = vmatmul.f32.gmra.mxu0 %v1873
    %v1895 = vpop.f32.mrf.mxu0
    %v1896 = vadd.f32 %v1823, %v1895
    %1897 = vdwg.mxu0
    %v1898 = vsel %vm89, %v1893, 0.0
    %1899 = vadd.xlane.f32.xlu0 %v1898
    %v1900 = vpop.xlane.xlu0 %1899
    %v1901 = vsel %vm89, %v1896, 0.0
    %1902 = vadd.xlane.f32.xlu0 %v1901
    %v1903 = vpop.xlane.xlu0 %1902
    %v1904 = vmul.f32 %v1900, %v845
    %v1905 = vmul.f32 %v1903, %v845
    %v1906 = vmul.f32 %v1893, %v1893
    %v1907 = vmul.f32 %v1896, %v1896
    %v1908 = vsel %vm89, %v1906, 0.0
    %1909 = vadd.xlane.f32.xlu0 %v1908
    %v1910 = vpop.xlane.xlu0 %1909
    %v1911 = vsel %vm89, %v1907, 0.0
    %1912 = vadd.xlane.f32.xlu0 %v1911
    %v1913 = vpop.xlane.xlu0 %1912
    %v1914 = vmul.f32 %v1910, %v845
    %v1915 = vmul.f32 %v1913, %v845
    %v1916 = vmul.f32 %v1904, %v1904
    %v1917 = vmul.f32 %v1905, %v1905
    %v1918 = vsub.f32 %v1914, %v1916
    %v1919 = vsub.f32 %v1915, %v1917
    %v1920 = vsub.f32 %v1893, %v1904
    %v1921 = vsub.f32 %v1896, %v1905
    %v1922 = vadd.f32 %v1918, 1e-05
    %v1923 = vadd.f32 %v1919, 1e-05
    %v1924 = vrsqrt.pop %v1922
    %v1925 = vmul.f32 %v1924, %v1922
    %v1926 = vmul.f32 %v1925, %v1924
    %v1927 = vmul.f32 0.5, %v1926
    %v1928 = vsub.f32 1.5, %v1927
    %v1929 = vmul.f32 %v1924, %v1928
    %vm1930 = vweird.f32 %v1922
    %vm1931 = vweird.f32 %v1924
    %vm1932 = vmor %vm1930, %vm1931
    %v1933 = vsel %vm1932, %v1924, %v1929
    %v1934 = vrsqrt.pop %v1923
    %v1935 = vmul.f32 %v1934, %v1923
    %v1936 = vmul.f32 %v1935, %v1934
    %v1937 = vmul.f32 0.5, %v1936
    %v1938 = vsub.f32 1.5, %v1937
    %v1939 = vmul.f32 %v1934, %v1938
    %vm1940 = vweird.f32 %v1923
    %vm1941 = vweird.f32 %v1934
    %vm1942 = vmor %vm1940, %vm1941
    %v1943 = vsel %vm1942, %v1934, %v1939
    %v1944 = vmul.f32 %v1920, %v1933
    %v1945 = vmul.f32 %v1921, %v1943
    %v1946 = vperm.slane %v1022, 2
    %v1947 = vmul.f32 %v1944, %v1946
    %v1948 = vmul.f32 %v1945, %v1946
    %v1949 = vperm.slane %v1022, 3
    %v1950 = vadd.f32 %v1947, %v1949
    %v1951 = vadd.f32 %v1948, %v1949
    %1952 = vst.msk [vmem:[#allocation7] sm:$0xff] %vm89, %v1950
    %1953 = vst.msk [vmem:[#allocation7 + $0x8] sm:$0xff] %vm89, %v1951
    // Predicated region
    $region42: #{tpu_custom_call.1} parent=1 // pred_check
      _
    $region43: #{tpu_custom_call.1} parent=1 // pred_check_branch
      %1955 = sbr.rel (0) target = $region45
    $region44: #{tpu_custom_call.1} parent=1 // pred_region
      %1957 = vsyncadd [#allocation4], 0
      %s1958 = sshll.u32 [#allocation7], 4
      %s1959 = int_to_ptr.vmem [resolvable:$true] %s1958
      %s1960 = sshll.u32 %s8, 4
      %s1961 = int_to_ptr.hbm [resolvable:$true] %s1960
      %1966 = dma.vmem_to_hbm [thread:$0]  %s1959, 256, %s1961, [#allocation4], 128, 128, 8
    $region45: #{tpu_custom_call.1} parent=1 // pred_fallthru
      _
    // Predicated region
    $region46: #{tpu_custom_call.1} parent=1 // pred_check
      _
    $region47: #{tpu_custom_call.1} parent=1 // pred_check_branch
      %1968 = sbr.rel (0) target = $region49
    $region48: #{tpu_custom_call.1} parent=1 // pred_region
      %1970 = vsyncadd [#allocation9], 0
      %s1971 = sshll.u32 [#allocation8], 4
      %s1972 = int_to_ptr.vmem [resolvable:$true] %s1971
      %s1973 = sshll.u32 %s9, 4
      %s1974 = int_to_ptr.hbm [resolvable:$true] %s1973
      %1979 = dma.vmem_to_hbm [thread:$0]  %s1972, 512, %s1974, [#allocation9], 128, 128, 8
    $region49: #{tpu_custom_call.1} parent=1 // pred_fallthru
      _
    // Predicated region
    $region50: #{tpu_custom_call.1} parent=1 // pred_check
      _
    $region51: #{tpu_custom_call.1} parent=1 // pred_check_branch
      %1981 = sbr.rel (0) target = $region53
    $region52: #{tpu_custom_call.1} parent=1 // pred_region
      %1983 = dma.done [#allocation4], 256
    $region53: #{tpu_custom_call.1} parent=1 // pred_fallthru
      _
    // Predicated region
    $region54: #{tpu_custom_call.1} parent=1 // pred_check
      _
    $region55: #{tpu_custom_call.1} parent=1 // pred_check_branch
      %1985 = sbr.rel (0) target = $region57
    $region56: #{tpu_custom_call.1} parent=1 // pred_region
      %1987 = dma.done [#allocation9], 512
    $region57: #{tpu_custom_call.1} parent=1 // pred_fallthru
      _
    %1988 = vsyncpa [#allocation3], 1
    %1989 = vsyncpa [#allocation6], 1
    %1990 = vsyncpa [#allocation4], 1
    %1991 = vsyncpa [#allocation9], 1

</llo_original>
